<compile_context>
chip_gen: v7x
topology: tpu7x:2x2x1
jax: 0.10.0
libtpu: 0.0.40
codegen_flags: <defaults>
</compile_context>

<pallas_src>
import functools

import jax
import jax.numpy as jnp
import numpy as np
from jax.experimental import pallas as pl
from jax.experimental.pallas import tpu as pltpu


def _round_up(x, m):
    return (x + m - 1) // m * m


def _cosrec_kernel(item_ref, w1_ref, b1_ref, wg2_ref, bg2_ref, out_ref, *,
                   ew_dtype):
    """Per-batch pair-sum feature: s = sum_{i,j} relu(fc2(relu(fc1([e_i, e_j]))))."""
    bblk, L, D = item_ref.shape
    Fp = wg2_ref.shape[1]

    # fc1 over concat(item_i, item_j) decomposed as e @ [W1_i | W1_j]:
    #   fc1([e_c, e_a]) = e_c @ W1_i + e_a @ W1_j + b1
    # (W1_i = fc1_w[:, :D] acts on the item_i half, W1_j = fc1_w[:, D:] on the
    #  item_j half.)
    e = item_ref[...].reshape(bblk * L, D)
    ab = jnp.dot(e.astype(jnp.bfloat16), w1_ref[...],
                 preferred_element_type=jnp.float32)            # (bblk*L, 2*Fp)
    # Bias added once in f32, then cast to the elementwise dtype (bf16 on
    # v6e/v7x halves VALU traffic of the dominant a+b / ReLU passes; f32 on
    # v5e which has no bf16 VALU).
    a = (ab[:, :Fp] + b1_ref[...]).astype(ew_dtype).reshape(bblk, L, Fp)
    b = ab[:, Fp:].astype(ew_dtype).reshape(bblk, L, Fp)

    wg2 = wg2_ref[...]
    bg2 = bg2_ref[...]

    # Pair-axis blocking: build only a (bblk*L, Fp) slice of h1 per step.
    # The accumulation into `s` chains the iterations so temporaries are
    # reused instead of materializing the full (bblk, L, L, Fp) slab.
    s = jnp.zeros((bblk, Fp), jnp.float32)
    for j in range(L):
        h1 = jnp.maximum(a + b[:, j:j + 1, :], 0).reshape(bblk * L, Fp)
        h2 = jnp.maximum(
            jnp.dot(h1.astype(jnp.bfloat16), wg2,
                    preferred_element_type=jnp.float32) + bg2,
            0.0)                                                # (bblk*L, Fp) f32
        s = s + h2.reshape(bblk, L, Fp).sum(axis=1)             # f32 pair-sum acc

    # TODO(synk): nn.Dropout(0.5) is identity in eval mode; training-mode dropout omitted.
    out_ref[...] = s


def cosrec_base_forward(seq_var, user_var, item_var, params, *, block_b=256):
    """for_pred=False path of CosRecBase.forward (eval-mode dropout)."""
    mb, L = seq_var.shape
    D = params['item_emb'].shape[1]
    F = params['fc1_w'].shape[0]
    Fp = _round_up(F, 128)
    pad_f = Fp - F

    # bf16 elementwise only where the VPU has bf16 VALUs (v6e/v7x); keep the
    # a+b / ReLU path in f32 on v5e-and-older (f32-only VPU).
    kind = jax.devices()[0].device_kind.lower()
    f32_only_vpu = any(t in kind for t in ("v2", "v3", "v4", "v5"))
    ew_dtype = jnp.float32 if f32_only_vpu else jnp.bfloat16

    # Batch block: multiple of 8 (sublane rule).  Prefer >= 2 grid steps when
    # possible so both v7x TensorCores get work via dimension_semantics.
    bblk = min(_round_up(block_b, 8), _round_up(mb, 8))
    while _round_up(mb, bblk) // bblk < 2 and bblk > 8:
        bblk = _round_up(bblk // 2, 8)
    mb_pad = _round_up(mb, bblk)
    nb = mb_pad // bblk

    # --- glue: embedding gather / parameter packing (plain JAX) ---
    item_embs = params['item_emb'][seq_var]                     # (mb, L, D)
    item_p = jnp.pad(item_embs, ((0, mb_pad - mb), (0, 0), (0, 0)))

    # F=100 is zero-padded to Fp=128 so every vreg op / matmul is lane-dense;
    # ReLU of the zero-padded lanes stays zero, so the pair sum is unchanged.
    w1_i = params['fc1_w'][:, :D].T                             # (D, F) item_i half
    w1_j = params['fc1_w'][:, D:].T                             # (D, F) item_j half
    w1 = jnp.concatenate(
        [jnp.pad(w1_i, ((0, 0), (0, pad_f))),
         jnp.pad(w1_j, ((0, 0), (0, pad_f)))],
        axis=1).astype(jnp.bfloat16)                            # (D, 2*Fp)
    b1 = jnp.pad(params['fc1_b'], (0, pad_f))[None, :]          # (1, Fp) f32
    wg2 = jnp.pad(params['fc2_w'].T,
                  ((0, pad_f), (0, pad_f))).astype(jnp.bfloat16)  # (Fp, Fp)
    bg2 = jnp.pad(params['fc2_b'], (0, pad_f))[None, :]         # (1, Fp) f32

    s_pad = pl.pallas_call(
        functools.partial(_cosrec_kernel, ew_dtype=ew_dtype),
        out_shape=jax.ShapeDtypeStruct((mb_pad, Fp), jnp.float32),
        grid=(nb,),
        in_specs=[
            pl.BlockSpec((bblk, L, D), lambda i: (i, 0, 0)),    # item embeddings
            pl.BlockSpec((D, 2 * Fp), lambda i: (0, 0)),        # fused fc1 W (bf16)
            pl.BlockSpec((1, Fp), lambda i: (0, 0)),            # fc1 bias
            pl.BlockSpec((Fp, Fp), lambda i: (0, 0)),           # fc2 W (bf16)
            pl.BlockSpec((1, Fp), lambda i: (0, 0)),            # fc2 bias
        ],
        out_specs=pl.BlockSpec((bblk, Fp), lambda i: (i, 0)),   # lane-dense (., 128)
        compiler_params=pltpu.CompilerParams(
            dimension_semantics=("parallel",)),
    )(item_p, w1, b1, wg2, bg2)

    s = s_pad[:mb, :F]                                          # (mb, F)

    # Final (mb, T, F+D) x (mb, F+D) score stays in XLA, where it fuses with
    # the W2/b2 gathers: no padded-W2 HBM round trip, no lane-sparse (bblk, T)
    # kernel store.
    user_emb = params['user_emb'][user_var[:, 0]]               # (mb, D)
    x = jnp.concatenate([s, user_emb], axis=1)                  # (mb, F+D)
    w2 = params['W2'][item_var]                                 # (mb, T, F+D)
    b2 = params['b2'][item_var][..., 0]                         # (mb, T)
    return jnp.einsum('btk,bk->bt', w2, x) + b2                 # (mb, T)


def reference_forward(seq_var, user_var, item_var, params):
    """Pure-JAX f32 transcription of the PyTorch forward (for_pred=False, eval)."""
    mb, L = seq_var.shape
    D = params['item_emb'].shape[1]
    F = params['fc1_w'].shape[0]

    item_embs = params['item_emb'][seq_var]                       # (mb, L, D)
    user_emb = params['user_emb'][user_var[:, 0]]                 # (mb, D)
    item_i = jnp.broadcast_to(item_embs[:, None, :, :], (mb, L, L, D))
    item_j = jnp.broadcast_to(item_embs[:, :, None, :], (mb, L, L, D))
    all_embed = jnp.concatenate([item_i, item_j], axis=3)         # (mb, L, L, 2D)
    x_ = all_embed.reshape(-1, 2 * D)
    x_ = jax.nn.relu(x_ @ params['fc1_w'].T + params['fc1_b'])
    x_ = jax.nn.relu(x_ @ params['fc2_w'].T + params['fc2_b'])
    x_g = x_.reshape(mb, -1, F)
    x = x_g.sum(1)
    x = jnp.concatenate([x, user_emb], axis=1)                    # (mb, F+D)
    w2 = params['W2'][item_var]                                   # (mb, T, F+D)
    b2 = params['b2'][item_var][..., 0]                           # (mb, T)
    return jnp.einsum('btk,bk->bt', w2, x) + b2                   # (mb, T)


def init_params(key, num_users, num_items, embed_dim, fc_dim):
    D, F = embed_dim, fc_dim
    ks = jax.random.split(key, 7)
    return {
        'user_emb': jax.random.normal(ks[0], (num_users, D), jnp.float32) / D,
        'item_emb': jax.random.normal(ks[1], (num_items, D), jnp.float32) / D,
        'W2': jax.random.normal(ks[2], (num_items, F + D), jnp.float32) / (F + D),
        'b2': jnp.zeros((num_items, 1), jnp.float32),
        'fc1_w': jax.random.normal(ks[3], (F, 2 * D), jnp.float32) / np.sqrt(2 * D),
        'fc1_b': jax.random.normal(ks[4], (F,), jnp.float32) * 0.01,
        'fc2_w': jax.random.normal(ks[5], (F, F), jnp.float32) / np.sqrt(F),
        'fc2_b': jax.random.normal(ks[6], (F,), jnp.float32) * 0.01,
    }


if __name__ == "__main__":
    num_users, num_items = 20, 50
    mb, seq_len, embed_dim, fc_dim, n_targets = 2, 8, 32, 100, 6

    key = jax.random.PRNGKey(0)
    kp, k1, k2, k3 = jax.random.split(key, 4)
    params = init_params(kp, num_users, num_items, embed_dim, fc_dim)

    seq_var = jax.random.randint(k1, (mb, seq_len), 0, num_items, dtype=jnp.int32)
    user_var = jax.random.randint(k2, (mb, 1), 0, num_users, dtype=jnp.int32)
    item_var = jax.random.randint(k3, (mb, n_targets), 0, num_items, dtype=jnp.int32)

    out = cosrec_base_forward(seq_var, user_var, item_var, params)
    out = jax.block_until_ready(out)

    ref = jax.block_until_ready(reference_forward(seq_var, user_var, item_var, params))
    # Tolerance loosened vs. pure f32: MXU operands (and on v6e/v7x the
    # dominant elementwise pass) are bf16; all accumulations stay f32.
    np.testing.assert_allclose(np.asarray(out), np.asarray(ref), rtol=2e-2, atol=2e-2)

    print("KERNEL_OK")
</pallas_src>

<mosaic_0001>
module attributes {stable_mosaic.version = 11 : i64} {
  func.func @_cosrec_kernel(%arg0: i32, %arg1: memref<8x8x32xf32, #tpu.memory_space<vmem>>, %arg2: memref<32x256xbf16, #tpu.memory_space<vmem>>, %arg3: memref<1x128xf32, #tpu.memory_space<vmem>>, %arg4: memref<128x128xbf16, #tpu.memory_space<vmem>>, %arg5: memref<1x128xf32, #tpu.memory_space<vmem>>, %arg6: memref<8x128xf32, #tpu.memory_space<vmem>>) attributes {dimension_semantics = [#tpu.dimension_semantics<parallel>], iteration_bounds = array<i64: 1>, scalar_prefetch = 0 : i64, scratch_operands = 0 : i64, tpu.core_type = #tpu.core_type<tc>, window_params = [{transform_indices = @transform_0, window_bounds = array<i64: 8, 8, 32>}, {pipeline_mode = #tpu.pipeline_mode<synchronous>, transform_indices = @transform_1, window_bounds = array<i64: 32, 256>}, {pipeline_mode = #tpu.pipeline_mode<synchronous>, transform_indices = @transform_2, window_bounds = array<i64: 1, 128>}, {pipeline_mode = #tpu.pipeline_mode<synchronous>, transform_indices = @transform_3, window_bounds = array<i64: 128, 128>}, {pipeline_mode = #tpu.pipeline_mode<synchronous>, transform_indices = @transform_4, window_bounds = array<i64: 1, 128>}, {transform_indices = @transform_5, window_bounds = array<i64: 8, 128>}]} {
    %c0 = arith.constant 0 : index
    %c0_0 = arith.constant 0 : index
    %c0_1 = arith.constant 0 : index
    %0 = vector.load %arg1[%c0, %c0_0, %c0_1] : memref<8x8x32xf32, #tpu.memory_space<vmem>>, vector<8x8x32xf32>
    %1 = vector.shape_cast %0 : vector<8x8x32xf32> to vector<64x32xf32>
    %2 = arith.truncf %1 : vector<64x32xf32> to vector<64x32xbf16>
    %c0_2 = arith.constant 0 : index
    %c0_3 = arith.constant 0 : index
    %3 = vector.load %arg2[%c0_2, %c0_3] : memref<32x256xbf16, #tpu.memory_space<vmem>>, vector<32x256xbf16>
    %cst = arith.constant dense<0.000000e+00> : vector<64x256xf32>
    %4 = tpu.matmul %2, %3, %cst {dimension_numbers = #tpu.dot_dimension_numbers<[1], [0], [0], [1], [0, 0, 1, 1], [], []>} : vector<64x32xbf16>, vector<32x256xbf16>, vector<64x256xf32> -> vector<64x256xf32>
    %5 = vector.extract_strided_slice %4 {offsets = [0, 0], sizes = [64, 128], strides = [1, 1]} : vector<64x256xf32> to vector<64x128xf32>
    %c0_4 = arith.constant 0 : index
    %c0_5 = arith.constant 0 : index
    %6 = vector.load %arg3[%c0_4, %c0_5] : memref<1x128xf32, #tpu.memory_space<vmem>>, vector<1x128xf32>
    %7 = vector.broadcast %6 : vector<1x128xf32> to vector<64x128xf32>
    %8 = arith.addf %5, %7 : vector<64x128xf32>
    %9 = arith.truncf %8 : vector<64x128xf32> to vector<64x128xbf16>
    %10 = vector.shape_cast %9 : vector<64x128xbf16> to vector<8x8x128xbf16>
    %11 = vector.extract_strided_slice %4 {offsets = [0, 128], sizes = [64, 128], strides = [1, 1]} : vector<64x256xf32> to vector<64x128xf32>
    %12 = arith.truncf %11 : vector<64x128xf32> to vector<64x128xbf16>
    %13 = vector.shape_cast %12 : vector<64x128xbf16> to vector<8x8x128xbf16>
    %c0_6 = arith.constant 0 : index
    %c0_7 = arith.constant 0 : index
    %14 = vector.load %arg4[%c0_6, %c0_7] : memref<128x128xbf16, #tpu.memory_space<vmem>>, vector<128x128xbf16>
    %c0_8 = arith.constant 0 : index
    %c0_9 = arith.constant 0 : index
    %15 = vector.load %arg5[%c0_8, %c0_9] : memref<1x128xf32, #tpu.memory_space<vmem>>, vector<1x128xf32>
    %cst_10 = arith.constant 0.000000e+00 : f32
    %16 = vector.broadcast %cst_10 : f32 to vector<8x128xf32>
    %17 = vector.extract_strided_slice %13 {offsets = [0, 0, 0], sizes = [8, 1, 128], strides = [1, 1, 1]} : vector<8x8x128xbf16> to vector<8x1x128xbf16>
    %18 = vector.broadcast %17 : vector<8x1x128xbf16> to vector<8x8x128xbf16>
    %19 = arith.addf %10, %18 : vector<8x8x128xbf16>
    %cst_11 = arith.constant 0.000000e+00 : bf16
    %20 = vector.broadcast %cst_11 : bf16 to vector<8x8x128xbf16>
    %21 = arith.maximumf %19, %20 : vector<8x8x128xbf16>
    %22 = vector.shape_cast %21 : vector<8x8x128xbf16> to vector<64x128xbf16>
    %cst_12 = arith.constant dense<0.000000e+00> : vector<64x128xf32>
    %23 = tpu.matmul %22, %14, %cst_12 {dimension_numbers = #tpu.dot_dimension_numbers<[1], [0], [0], [1], [0, 0, 1, 1], [], []>} : vector<64x128xbf16>, vector<128x128xbf16>, vector<64x128xf32> -> vector<64x128xf32>
    %24 = vector.broadcast %15 : vector<1x128xf32> to vector<64x128xf32>
    %25 = arith.addf %23, %24 : vector<64x128xf32>
    %cst_13 = arith.constant 0.000000e+00 : f32
    %26 = vector.broadcast %cst_13 : f32 to vector<64x128xf32>
    %27 = arith.maximumf %25, %26 : vector<64x128xf32>
    %28 = vector.shape_cast %27 : vector<64x128xf32> to vector<8x8x128xf32>
    %cst_14 = arith.constant dense<0.000000e+00> : vector<8x128xf32>
    %29 = vector.multi_reduction <add>, %28, %cst_14 [1] : vector<8x8x128xf32> to vector<8x128xf32>
    %30 = arith.addf %16, %29 : vector<8x128xf32>
    %31 = vector.extract_strided_slice %13 {offsets = [0, 1, 0], sizes = [8, 1, 128], strides = [1, 1, 1]} : vector<8x8x128xbf16> to vector<8x1x128xbf16>
    %32 = vector.broadcast %31 : vector<8x1x128xbf16> to vector<8x8x128xbf16>
    %33 = arith.addf %10, %32 : vector<8x8x128xbf16>
    %cst_15 = arith.constant 0.000000e+00 : bf16
    %34 = vector.broadcast %cst_15 : bf16 to vector<8x8x128xbf16>
    %35 = arith.maximumf %33, %34 : vector<8x8x128xbf16>
    %36 = vector.shape_cast %35 : vector<8x8x128xbf16> to vector<64x128xbf16>
    %cst_16 = arith.constant dense<0.000000e+00> : vector<64x128xf32>
    %37 = tpu.matmul %36, %14, %cst_16 {dimension_numbers = #tpu.dot_dimension_numbers<[1], [0], [0], [1], [0, 0, 1, 1], [], []>} : vector<64x128xbf16>, vector<128x128xbf16>, vector<64x128xf32> -> vector<64x128xf32>
    %38 = vector.broadcast %15 : vector<1x128xf32> to vector<64x128xf32>
    %39 = arith.addf %37, %38 : vector<64x128xf32>
    %cst_17 = arith.constant 0.000000e+00 : f32
    %40 = vector.broadcast %cst_17 : f32 to vector<64x128xf32>
    %41 = arith.maximumf %39, %40 : vector<64x128xf32>
    %42 = vector.shape_cast %41 : vector<64x128xf32> to vector<8x8x128xf32>
    %cst_18 = arith.constant dense<0.000000e+00> : vector<8x128xf32>
    %43 = vector.multi_reduction <add>, %42, %cst_18 [1] : vector<8x8x128xf32> to vector<8x128xf32>
    %44 = arith.addf %30, %43 : vector<8x128xf32>
    %45 = vector.extract_strided_slice %13 {offsets = [0, 2, 0], sizes = [8, 1, 128], strides = [1, 1, 1]} : vector<8x8x128xbf16> to vector<8x1x128xbf16>
    %46 = vector.broadcast %45 : vector<8x1x128xbf16> to vector<8x8x128xbf16>
    %47 = arith.addf %10, %46 : vector<8x8x128xbf16>
    %cst_19 = arith.constant 0.000000e+00 : bf16
    %48 = vector.broadcast %cst_19 : bf16 to vector<8x8x128xbf16>
    %49 = arith.maximumf %47, %48 : vector<8x8x128xbf16>
    %50 = vector.shape_cast %49 : vector<8x8x128xbf16> to vector<64x128xbf16>
    %cst_20 = arith.constant dense<0.000000e+00> : vector<64x128xf32>
    %51 = tpu.matmul %50, %14, %cst_20 {dimension_numbers = #tpu.dot_dimension_numbers<[1], [0], [0], [1], [0, 0, 1, 1], [], []>} : vector<64x128xbf16>, vector<128x128xbf16>, vector<64x128xf32> -> vector<64x128xf32>
    %52 = vector.broadcast %15 : vector<1x128xf32> to vector<64x128xf32>
    %53 = arith.addf %51, %52 : vector<64x128xf32>
    %cst_21 = arith.constant 0.000000e+00 : f32
    %54 = vector.broadcast %cst_21 : f32 to vector<64x128xf32>
    %55 = arith.maximumf %53, %54 : vector<64x128xf32>
    %56 = vector.shape_cast %55 : vector<64x128xf32> to vector<8x8x128xf32>
    %cst_22 = arith.constant dense<0.000000e+00> : vector<8x128xf32>
    %57 = vector.multi_reduction <add>, %56, %cst_22 [1] : vector<8x8x128xf32> to vector<8x128xf32>
    %58 = arith.addf %44, %57 : vector<8x128xf32>
    %59 = vector.extract_strided_slice %13 {offsets = [0, 3, 0], sizes = [8, 1, 128], strides = [1, 1, 1]} : vector<8x8x128xbf16> to vector<8x1x128xbf16>
    %60 = vector.broadcast %59 : vector<8x1x128xbf16> to vector<8x8x128xbf16>
    %61 = arith.addf %10, %60 : vector<8x8x128xbf16>
    %cst_23 = arith.constant 0.000000e+00 : bf16
    %62 = vector.broadcast %cst_23 : bf16 to vector<8x8x128xbf16>
    %63 = arith.maximumf %61, %62 : vector<8x8x128xbf16>
    %64 = vector.shape_cast %63 : vector<8x8x128xbf16> to vector<64x128xbf16>
    %cst_24 = arith.constant dense<0.000000e+00> : vector<64x128xf32>
    %65 = tpu.matmul %64, %14, %cst_24 {dimension_numbers = #tpu.dot_dimension_numbers<[1], [0], [0], [1], [0, 0, 1, 1], [], []>} : vector<64x128xbf16>, vector<128x128xbf16>, vector<64x128xf32> -> vector<64x128xf32>
    %66 = vector.broadcast %15 : vector<1x128xf32> to vector<64x128xf32>
    %67 = arith.addf %65, %66 : vector<64x128xf32>
    %cst_25 = arith.constant 0.000000e+00 : f32
    %68 = vector.broadcast %cst_25 : f32 to vector<64x128xf32>
    %69 = arith.maximumf %67, %68 : vector<64x128xf32>
    %70 = vector.shape_cast %69 : vector<64x128xf32> to vector<8x8x128xf32>
    %cst_26 = arith.constant dense<0.000000e+00> : vector<8x128xf32>
    %71 = vector.multi_reduction <add>, %70, %cst_26 [1] : vector<8x8x128xf32> to vector<8x128xf32>
    %72 = arith.addf %58, %71 : vector<8x128xf32>
    %73 = vector.extract_strided_slice %13 {offsets = [0, 4, 0], sizes = [8, 1, 128], strides = [1, 1, 1]} : vector<8x8x128xbf16> to vector<8x1x128xbf16>
    %74 = vector.broadcast %73 : vector<8x1x128xbf16> to vector<8x8x128xbf16>
    %75 = arith.addf %10, %74 : vector<8x8x128xbf16>
    %cst_27 = arith.constant 0.000000e+00 : bf16
    %76 = vector.broadcast %cst_27 : bf16 to vector<8x8x128xbf16>
    %77 = arith.maximumf %75, %76 : vector<8x8x128xbf16>
    %78 = vector.shape_cast %77 : vector<8x8x128xbf16> to vector<64x128xbf16>
    %cst_28 = arith.constant dense<0.000000e+00> : vector<64x128xf32>
    %79 = tpu.matmul %78, %14, %cst_28 {dimension_numbers = #tpu.dot_dimension_numbers<[1], [0], [0], [1], [0, 0, 1, 1], [], []>} : vector<64x128xbf16>, vector<128x128xbf16>, vector<64x128xf32> -> vector<64x128xf32>
    %80 = vector.broadcast %15 : vector<1x128xf32> to vector<64x128xf32>
    %81 = arith.addf %79, %80 : vector<64x128xf32>
    %cst_29 = arith.constant 0.000000e+00 : f32
    %82 = vector.broadcast %cst_29 : f32 to vector<64x128xf32>
    %83 = arith.maximumf %81, %82 : vector<64x128xf32>
    %84 = vector.shape_cast %83 : vector<64x128xf32> to vector<8x8x128xf32>
    %cst_30 = arith.constant dense<0.000000e+00> : vector<8x128xf32>
    %85 = vector.multi_reduction <add>, %84, %cst_30 [1] : vector<8x8x128xf32> to vector<8x128xf32>
    %86 = arith.addf %72, %85 : vector<8x128xf32>
    %87 = vector.extract_strided_slice %13 {offsets = [0, 5, 0], sizes = [8, 1, 128], strides = [1, 1, 1]} : vector<8x8x128xbf16> to vector<8x1x128xbf16>
    %88 = vector.broadcast %87 : vector<8x1x128xbf16> to vector<8x8x128xbf16>
    %89 = arith.addf %10, %88 : vector<8x8x128xbf16>
    %cst_31 = arith.constant 0.000000e+00 : bf16
    %90 = vector.broadcast %cst_31 : bf16 to vector<8x8x128xbf16>
    %91 = arith.maximumf %89, %90 : vector<8x8x128xbf16>
    %92 = vector.shape_cast %91 : vector<8x8x128xbf16> to vector<64x128xbf16>
    %cst_32 = arith.constant dense<0.000000e+00> : vector<64x128xf32>
    %93 = tpu.matmul %92, %14, %cst_32 {dimension_numbers = #tpu.dot_dimension_numbers<[1], [0], [0], [1], [0, 0, 1, 1], [], []>} : vector<64x128xbf16>, vector<128x128xbf16>, vector<64x128xf32> -> vector<64x128xf32>
    %94 = vector.broadcast %15 : vector<1x128xf32> to vector<64x128xf32>
    %95 = arith.addf %93, %94 : vector<64x128xf32>
    %cst_33 = arith.constant 0.000000e+00 : f32
    %96 = vector.broadcast %cst_33 : f32 to vector<64x128xf32>
    %97 = arith.maximumf %95, %96 : vector<64x128xf32>
    %98 = vector.shape_cast %97 : vector<64x128xf32> to vector<8x8x128xf32>
    %cst_34 = arith.constant dense<0.000000e+00> : vector<8x128xf32>
    %99 = vector.multi_reduction <add>, %98, %cst_34 [1] : vector<8x8x128xf32> to vector<8x128xf32>
    %100 = arith.addf %86, %99 : vector<8x128xf32>
    %101 = vector.extract_strided_slice %13 {offsets = [0, 6, 0], sizes = [8, 1, 128], strides = [1, 1, 1]} : vector<8x8x128xbf16> to vector<8x1x128xbf16>
    %102 = vector.broadcast %101 : vector<8x1x128xbf16> to vector<8x8x128xbf16>
    %103 = arith.addf %10, %102 : vector<8x8x128xbf16>
    %cst_35 = arith.constant 0.000000e+00 : bf16
    %104 = vector.broadcast %cst_35 : bf16 to vector<8x8x128xbf16>
    %105 = arith.maximumf %103, %104 : vector<8x8x128xbf16>
    %106 = vector.shape_cast %105 : vector<8x8x128xbf16> to vector<64x128xbf16>
    %cst_36 = arith.constant dense<0.000000e+00> : vector<64x128xf32>
    %107 = tpu.matmul %106, %14, %cst_36 {dimension_numbers = #tpu.dot_dimension_numbers<[1], [0], [0], [1], [0, 0, 1, 1], [], []>} : vector<64x128xbf16>, vector<128x128xbf16>, vector<64x128xf32> -> vector<64x128xf32>
    %108 = vector.broadcast %15 : vector<1x128xf32> to vector<64x128xf32>
    %109 = arith.addf %107, %108 : vector<64x128xf32>
    %cst_37 = arith.constant 0.000000e+00 : f32
    %110 = vector.broadcast %cst_37 : f32 to vector<64x128xf32>
    %111 = arith.maximumf %109, %110 : vector<64x128xf32>
    %112 = vector.shape_cast %111 : vector<64x128xf32> to vector<8x8x128xf32>
    %cst_38 = arith.constant dense<0.000000e+00> : vector<8x128xf32>
    %113 = vector.multi_reduction <add>, %112, %cst_38 [1] : vector<8x8x128xf32> to vector<8x128xf32>
    %114 = arith.addf %100, %113 : vector<8x128xf32>
    %115 = vector.extract_strided_slice %13 {offsets = [0, 7, 0], sizes = [8, 1, 128], strides = [1, 1, 1]} : vector<8x8x128xbf16> to vector<8x1x128xbf16>
    %116 = vector.broadcast %115 : vector<8x1x128xbf16> to vector<8x8x128xbf16>
    %117 = arith.addf %10, %116 : vector<8x8x128xbf16>
    %cst_39 = arith.constant 0.000000e+00 : bf16
    %118 = vector.broadcast %cst_39 : bf16 to vector<8x8x128xbf16>
    %119 = arith.maximumf %117, %118 : vector<8x8x128xbf16>
    %120 = vector.shape_cast %119 : vector<8x8x128xbf16> to vector<64x128xbf16>
    %cst_40 = arith.constant dense<0.000000e+00> : vector<64x128xf32>
    %121 = tpu.matmul %120, %14, %cst_40 {dimension_numbers = #tpu.dot_dimension_numbers<[1], [0], [0], [1], [0, 0, 1, 1], [], []>} : vector<64x128xbf16>, vector<128x128xbf16>, vector<64x128xf32> -> vector<64x128xf32>
    %122 = vector.broadcast %15 : vector<1x128xf32> to vector<64x128xf32>
    %123 = arith.addf %121, %122 : vector<64x128xf32>
    %cst_41 = arith.constant 0.000000e+00 : f32
    %124 = vector.broadcast %cst_41 : f32 to vector<64x128xf32>
    %125 = arith.maximumf %123, %124 : vector<64x128xf32>
    %126 = vector.shape_cast %125 : vector<64x128xf32> to vector<8x8x128xf32>
    %cst_42 = arith.constant dense<0.000000e+00> : vector<8x128xf32>
    %127 = vector.multi_reduction <add>, %126, %cst_42 [1] : vector<8x8x128xf32> to vector<8x128xf32>
    %128 = arith.addf %114, %127 : vector<8x128xf32>
    %c0_43 = arith.constant 0 : index
    %c0_44 = arith.constant 0 : index
    %129 = vector.load %arg6[%c0_43, %c0_44] : memref<8x128xf32, #tpu.memory_space<vmem>>, vector<8x128xf32>
    tpu.vector_store %arg6[%c0_43, %c0_44], %128 {strides = array<i32>} : memref<8x128xf32, #tpu.memory_space<vmem>>, vector<8x128xf32>,
    return
  }
  func.func @transform_0(%arg0: i32) -> (i32, i32, i32) {
    %c0_i32 = arith.constant 0 : i32
    %c0_i32_0 = arith.constant 0 : i32
    %c0_i32_1 = arith.constant 0 : i32
    return %arg0, %c0_i32, %c0_i32_0 : i32, i32, i32
  }
  func.func @transform_1(%arg0: i32) -> (i32, i32) {
    %c0_i32 = arith.constant 0 : i32
    %c0_i32_0 = arith.constant 0 : i32
    %c0_i32_1 = arith.constant 0 : i32
    return %c0_i32, %c0_i32_0 : i32, i32
  }
  func.func @transform_2(%arg0: i32) -> (i32, i32) {
    %c0_i32 = arith.constant 0 : i32
    %c0_i32_0 = arith.constant 0 : i32
    %c0_i32_1 = arith.constant 0 : i32
    return %c0_i32, %c0_i32_0 : i32, i32
  }
  func.func @transform_3(%arg0: i32) -> (i32, i32) {
    %c0_i32 = arith.constant 0 : i32
    %c0_i32_0 = arith.constant 0 : i32
    %c0_i32_1 = arith.constant 0 : i32
    return %c0_i32, %c0_i32_0 : i32, i32
  }
  func.func @transform_4(%arg0: i32) -> (i32, i32) {
    %c0_i32 = arith.constant 0 : i32
    %c0_i32_0 = arith.constant 0 : i32
    %c0_i32_1 = arith.constant 0 : i32
    return %c0_i32, %c0_i32_0 : i32, i32
  }
  func.func @transform_5(%arg0: i32) -> (i32, i32) {
    %c0_i32 = arith.constant 0 : i32
    %c0_i32_0 = arith.constant 0 : i32
    return %arg0, %c0_i32 : i32, i32
  }
}

</mosaic_0001>

<llo_original>
// kernel: tpu_custom_call.1
$region0: #{tpu_custom_call.1}
  #allocation0 [shape = 'u32[]', space=smem, size = 0x4, offset = 0x4, fixed_abs, tag = 'smem constant byte address 0x4 - core index']
  #allocation1 [shape = 'u32[144,128]{1,0:T(1,128)}', space=vmem, size = 0x12000, scoped, tag = 'internal scratch']
  %s0 = inlined_call_operand.hbm [shape: f32[8,8,32], index: 0, kind: input, shape index: {}]
  %s1 = inlined_call_operand.hbm [shape: bf16[32,256], index: 1, kind: input, shape index: {}]
  %s2 = inlined_call_operand.vmem [shape: f32[1,128], index: 2, kind: input, shape index: {}]
  %s3 = inlined_call_operand.hbm [shape: bf16[128,128], index: 3, kind: input, shape index: {}]
  %s4 = inlined_call_operand.vmem [shape: f32[1,128], index: 4, kind: input, shape index: {}]
  %s5 = inlined_call_operand.hbm [shape: f32[8,128], index: 5, kind: output, shape index: {}]
  %s6 = sld [smem:[#allocation0]]
  $region42: #{tpu_custom_call.1} parent=0
    _
  %s8 = ssub.s32 1, %s6
  %s9 = scalar_select 0, %s8, %s6
  $region1: #{tpu_custom_call.1} parent=0
    #allocation2 [shape = 'u8[32768]{0}', space=vmem, size = 0x8000, scoped, tag = 'input window, operand 0, single buffered']
    #allocation3 [shape = 's32[1]{0}', space=sflag, size = 0x4, scoped, tag = 'scoped memory for tpu_custom_call.1']
    #allocation4 [shape = 's32[1]{0}', space=sflag, size = 0x4, scoped, tag = 'scoped memory for tpu_custom_call.1']
    #allocation5 [shape = 'u8[16384]{0}', space=vmem, size = 0x4000, scoped, tag = 'input window, operand 1, single buffered']
    #allocation6 [shape = 's32[1]{0}', space=sflag, size = 0x4, scoped, tag = 'scoped memory for tpu_custom_call.1']
    #allocation7 [shape = 'u8[32768]{0}', space=vmem, size = 0x8000, scoped, tag = 'input window, operand 3, single buffered']
    #allocation8 [shape = 'u8[4096]{0}', space=vmem, size = 0x1000, scoped, tag = 'output window, operand 0, single buffered']
    %10 = vsyncpa [#allocation3], 0
    %11 = vsyncpa [#allocation6], 0
    %12 = vsyncpa [#allocation4], 0
    // Predicated region
    $region2: #{tpu_custom_call.1} parent=1 // pred_check
      _
    $region3: #{tpu_custom_call.1} parent=1 // pred_check_branch
      %14 = sbr.rel (0) target = $region5
    $region4: #{tpu_custom_call.1} parent=1 // pred_region
      %s16 = ssub.s32 1024, 1024
      %17 = vsyncadd [#allocation3], %s16
      %s18 = sshll.u32 [#allocation2], 4
      %s19 = int_to_ptr.vmem [resolvable:$true] %s18
      %24 = dma.hbm_to_vmem [thread:$0]  %s0, 1024, %s19, [#allocation3], 128, 128, 8
    $region5: #{tpu_custom_call.1} parent=1 // pred_fallthru
      _
    // Predicated region
    $region6: #{tpu_custom_call.1} parent=1 // pred_check
      _
    $region7: #{tpu_custom_call.1} parent=1 // pred_check_branch
      %26 = sbr.rel (0) target = $region9
    $region8: #{tpu_custom_call.1} parent=1 // pred_region
      %s28 = ssub.s32 512, 512
      %29 = vsyncadd [#allocation6], %s28
      %s30 = sshll.u32 [#allocation5], 4
      %s31 = int_to_ptr.vmem [resolvable:$true] %s30
      %36 = dma.hbm_to_vmem [thread:$0]  %s1, 512, %s31, [#allocation6], 128, 128, 8
    $region9: #{tpu_custom_call.1} parent=1 // pred_fallthru
      _
    // Predicated region
    $region10: #{tpu_custom_call.1} parent=1 // pred_check
      _
    $region11: #{tpu_custom_call.1} parent=1 // pred_check_branch
      %38 = sbr.rel (0) target = $region13
    $region12: #{tpu_custom_call.1} parent=1 // pred_region
      _
    $region13: #{tpu_custom_call.1} parent=1 // pred_fallthru
      _
    // Predicated region
    $region14: #{tpu_custom_call.1} parent=1 // pred_check
      _
    $region15: #{tpu_custom_call.1} parent=1 // pred_check_branch
      %40 = sbr.rel (0) target = $region17
    $region16: #{tpu_custom_call.1} parent=1 // pred_region
      %s42 = ssub.s32 1024, 1024
      %43 = vsyncadd [#allocation6], %s42
      %s44 = sshll.u32 [#allocation7], 4
      %s45 = int_to_ptr.vmem [resolvable:$true] %s44
      %50 = dma.hbm_to_vmem [thread:$0]  %s3, 1024, %s45, [#allocation6], 64, 64, 4
    $region17: #{tpu_custom_call.1} parent=1 // pred_fallthru
      _
    // Predicated region
    $region18: #{tpu_custom_call.1} parent=1 // pred_check
      _
    $region19: #{tpu_custom_call.1} parent=1 // pred_check_branch
      %52 = sbr.rel (0) target = $region21
    $region20: #{tpu_custom_call.1} parent=1 // pred_region
      _
    $region21: #{tpu_custom_call.1} parent=1 // pred_fallthru
      _
    // Predicated region
    $region22: #{tpu_custom_call.1} parent=1 // pred_check
      _
    $region23: #{tpu_custom_call.1} parent=1 // pred_check_branch
      %54 = sbr.rel (0) target = $region25
    $region24: #{tpu_custom_call.1} parent=1 // pred_region
      %55 = dma.done [#allocation3], 1024
    $region25: #{tpu_custom_call.1} parent=1 // pred_fallthru
      _
    // Predicated region
    $region26: #{tpu_custom_call.1} parent=1 // pred_check
      _
    $region27: #{tpu_custom_call.1} parent=1 // pred_check_branch
      %57 = sbr.rel (0) target = $region29
    $region28: #{tpu_custom_call.1} parent=1 // pred_region
      %58 = dma.done [#allocation6], 512
    $region29: #{tpu_custom_call.1} parent=1 // pred_fallthru
      _
    // Predicated region
    $region30: #{tpu_custom_call.1} parent=1 // pred_check
      _
    $region31: #{tpu_custom_call.1} parent=1 // pred_check_branch
      %60 = sbr.rel (0) target = $region33
    $region32: #{tpu_custom_call.1} parent=1 // pred_region
      %61 = dma.done [#allocation6], 1024
    $region33: #{tpu_custom_call.1} parent=1 // pred_fallthru
      _
    %v63 = vld [vmem:[#allocation2] sm:$0xff]
    %v64 = vld [vmem:[#allocation2 + $0x8] sm:$0xff]
    %v65 = vld [vmem:[#allocation2 + $0x10] sm:$0xff]
    %v66 = vld [vmem:[#allocation2 + $0x18] sm:$0xff]
    %v67 = vld [vmem:[#allocation2 + $0x20] sm:$0xff]
    %v68 = vld [vmem:[#allocation2 + $0x28] sm:$0xff]
    %v69 = vld [vmem:[#allocation2 + $0x30] sm:$0xff]
    %v70 = vld [vmem:[#allocation2 + $0x38] sm:$0xff]
    %v71 = vpack.c.bf16 %v64, %v63
    %v72 = vpack.c.bf16 %v66, %v65
    %v73 = vpack.c.bf16 %v68, %v67
    %v74 = vpack.c.bf16 %v70, %v69
    %v75 = vld [vmem:[#allocation5] sm:$0xff]
    %v76 = vld [vmem:[#allocation5 + $0x8] sm:$0xff]
    %v77 = vld [vmem:[#allocation5 + $0x10] sm:$0xff]
    %v78 = vld [vmem:[#allocation5 + $0x18] sm:$0xff]
    %v83 = vunpack.c.l.b16 %v75
    %v84 = vunpack.c.h.b16 %v75
    %v85 = vunpack.c.l.b16 %v76
    %v86 = vunpack.c.h.b16 %v76
    %v87 = vunpack.c.l.b16 %v77
    %v88 = vunpack.c.h.b16 %v77
    %v89 = vunpack.c.l.b16 %v78
    %v90 = vunpack.c.h.b16 %v78
    %v91 = vpack.c.b16 %v85, %v83
    %v92 = vpack.c.b16 %v86, %v84
    %v93 = vpack.c.b16 %v89, %v87
    %v94 = vpack.c.b16 %v90, %v88
    %vm99 = vcmask 261120
    %v101 = vsel %vm99, %v71, 0
    %v104 = vsel %vm99, %v72, 0
    %v107 = vsel %vm99, %v73, 0
    %v110 = vsel %vm99, %v74, 0
    %112 = vmatprep.subr.bf16.mxu0 %v92
    %113 = vmatpush1.bf16.msra.mxu0 %v91
    %114 = vmatprep.subr.bf16.mxu0 %v94
    %115 = vmatpush1.bf16.msra.mxu0 %v93
    %116 = vmatprep.subr.bf16.mxu0 0
    %117 = vmatpush1.bf16.msra.mxu0 0
    %118 = vmatprep.subr.bf16.mxu0 0
    %119 = vmatpush1.bf16.msra.mxu0 0
    %120 = vmatprep.subr.bf16.mxu0 0
    %121 = vmatpush1.bf16.msra.mxu0 0
    %122 = vmatprep.subr.bf16.mxu0 0
    %123 = vmatpush1.bf16.msra.mxu0 0
    %124 = vmatprep.subr.bf16.mxu0 0
    %125 = vmatpush1.bf16.msra.mxu0 0
    %126 = vmatprep.subr.bf16.mxu0 0
    %127 = vmatpush1.bf16.msra.mxu0 0
    %128 = vmatprep.subr.bf16.mxu0 0
    %129 = vmatpush1.bf16.msra.mxu0 0
    %130 = vmatprep.subr.bf16.mxu0 0
    %131 = vmatpush1.bf16.msra.mxu0 0
    %132 = vmatprep.subr.bf16.mxu0 0
    %133 = vmatpush1.bf16.msra.mxu0 0
    %134 = vmatprep.subr.bf16.mxu0 0
    %135 = vmatpush1.bf16.msra.mxu0 0
    %136 = vmatprep.subr.bf16.mxu0 0
    %137 = vmatpush1.bf16.msra.mxu0 0
    %138 = vmatprep.subr.bf16.mxu0 0
    %139 = vmatpush1.bf16.msra.mxu0 0
    %140 = vmatprep.subr.bf16.mxu0 0
    %141 = vmatpush1.bf16.msra.mxu0 0
    %142 = vmatprep.subr.bf16.mxu0 0
    %143 = vmatpush1.bf16.msra.mxu0 0
    %144 = vmatprep.mubr.bf16.mxu0 0
    %145 = vmatmul.mubr.bf16.gmra.mrb[0].mxu0 %v101
    %v146 = vpop.f32.mrb[0].mxu0
    %v147 = vadd.f32 0.0, %v146
    %v148 = vpop.f32.mrb[0].mxu0
    %v149 = vadd.f32 0.0, %v148
    %v150 = vpop.f32.mrb[0].mxu0
    %v151 = vadd.f32 0.0, %v150
    %v152 = vpop.f32.mrb[0].mxu0
    %v153 = vadd.f32 0.0, %v152
    %154 = vmatprep.mubr.bf16.mxu0 0
    %155 = vmatmul.mubr.bf16.gmra.mrb[0].mxu0 %v104
    %v156 = vpop.f32.mrb[0].mxu0
    %v157 = vadd.f32 0.0, %v156
    %v158 = vpop.f32.mrb[0].mxu0
    %v159 = vadd.f32 0.0, %v158
    %v160 = vpop.f32.mrb[0].mxu0
    %v161 = vadd.f32 0.0, %v160
    %v162 = vpop.f32.mrb[0].mxu0
    %v163 = vadd.f32 0.0, %v162
    %164 = vmatprep.mubr.bf16.mxu0 0
    %165 = vmatmul.mubr.bf16.gmra.mrb[0].mxu0 %v107
    %v166 = vpop.f32.mrb[0].mxu0
    %v167 = vadd.f32 0.0, %v166
    %v168 = vpop.f32.mrb[0].mxu0
    %v169 = vadd.f32 0.0, %v168
    %v170 = vpop.f32.mrb[0].mxu0
    %v171 = vadd.f32 0.0, %v170
    %v172 = vpop.f32.mrb[0].mxu0
    %v173 = vadd.f32 0.0, %v172
    %174 = vmatprep.mubr.bf16.mxu0 0
    %175 = vmatmul.mubr.bf16.gmra.mrb[0].mxu0 %v110
    %v176 = vpop.f32.mrb[0].mxu0
    %v177 = vadd.f32 0.0, %v176
    %v178 = vpop.f32.mrb[0].mxu0
    %v179 = vadd.f32 0.0, %v178
    %v180 = vpop.f32.mrb[0].mxu0
    %v181 = vadd.f32 0.0, %v180
    %v182 = vpop.f32.mrb[0].mxu0
    %v183 = vadd.f32 0.0, %v182
    %184 = vdwg.mxu0
    %v185 = vld [vmem:[%s2] sm:$0x1]
    %v187 = vlaneseq
    %v188 = vshrl.u32 %v187, 7
    %v189 = vsub.s32 0, %v188
    %v190 = vrot.slane %v185, %v189
    %v192 = vadd.f32 %v147, %v190
    %v193 = vadd.f32 %v151, %v190
    %v194 = vadd.f32 %v157, %v190
    %v195 = vadd.f32 %v161, %v190
    %v196 = vadd.f32 %v167, %v190
    %v197 = vadd.f32 %v171, %v190
    %v198 = vadd.f32 %v177, %v190
    %v199 = vadd.f32 %v181, %v190
    %v200 = vpack.c.bf16 %v193, %v192
    %v201 = vpack.c.bf16 %v195, %v194
    %v202 = vpack.c.bf16 %v197, %v196
    %v203 = vpack.c.bf16 %v199, %v198
    %v208 = vunpack.c.l.b16 %v200
    %v209 = vunpack.c.h.b16 %v200
    %v210 = vunpack.c.l.b16 %v201
    %v211 = vunpack.c.h.b16 %v201
    %v212 = vunpack.c.l.b16 %v202
    %v213 = vunpack.c.h.b16 %v202
    %v214 = vunpack.c.l.b16 %v203
    %v215 = vunpack.c.h.b16 %v203
    %v216 = vpack.c.b16 %v208, %v208
    %v217 = vpack.c.b16 %v209, %v209
    %v218 = vpack.c.b16 %v210, %v210
    %v219 = vpack.c.b16 %v211, %v211
    %v220 = vpack.c.b16 %v212, %v212
    %v221 = vpack.c.b16 %v213, %v213
    %v222 = vpack.c.b16 %v214, %v214
    %v223 = vpack.c.b16 %v215, %v215
    %v232 = vpack.c.bf16 %v153, %v149
    %v233 = vpack.c.bf16 %v163, %v159
    %v234 = vpack.c.bf16 %v173, %v169
    %v235 = vpack.c.bf16 %v183, %v179
    %v240 = vunpack.c.l.b16 %v232
    %v241 = vunpack.c.h.b16 %v232
    %v242 = vunpack.c.l.b16 %v233
    %v243 = vunpack.c.h.b16 %v233
    %v244 = vunpack.c.l.b16 %v234
    %v245 = vunpack.c.h.b16 %v234
    %v246 = vunpack.c.l.b16 %v235
    %v247 = vunpack.c.h.b16 %v235
    %v248 = vpack.c.b16 %v240, %v240
    %v249 = vpack.c.b16 %v241, %v241
    %v250 = vpack.c.b16 %v242, %v242
    %v251 = vpack.c.b16 %v243, %v243
    %v252 = vpack.c.b16 %v244, %v244
    %v253 = vpack.c.b16 %v245, %v245
    %v254 = vpack.c.b16 %v246, %v246
    %v255 = vpack.c.b16 %v247, %v247
    %v256 = vld [vmem:[#allocation7] sm:$0xf]
    %v257 = vld [vmem:[#allocation7 + $0x4] sm:$0xf]
    %v258 = vld [vmem:[#allocation7 + $0x8] sm:$0xf]
    %v259 = vld [vmem:[#allocation7 + $0xc] sm:$0xf]
    %v260 = vld [vmem:[#allocation7 + $0x10] sm:$0xf]
    %v261 = vld [vmem:[#allocation7 + $0x14] sm:$0xf]
    %v262 = vld [vmem:[#allocation7 + $0x18] sm:$0xf]
    %v263 = vld [vmem:[#allocation7 + $0x1c] sm:$0xf]
    %v264 = vld [vmem:[#allocation7 + $0x20] sm:$0xf]
    %v265 = vld [vmem:[#allocation7 + $0x24] sm:$0xf]
    %v266 = vld [vmem:[#allocation7 + $0x28] sm:$0xf]
    %v267 = vld [vmem:[#allocation7 + $0x2c] sm:$0xf]
    %v268 = vld [vmem:[#allocation7 + $0x30] sm:$0xf]
    %v269 = vld [vmem:[#allocation7 + $0x34] sm:$0xf]
    %v270 = vld [vmem:[#allocation7 + $0x38] sm:$0xf]
    %v271 = vld [vmem:[#allocation7 + $0x3c] sm:$0xf]
    %v272 = vld [vmem:[%s4] sm:$0x1]
    %v274 = vpack.i.b16 %v248, %v248
    %v276 = vlaneseq
    %v277 = vshrl.u32 %v276, 7
    %v278 = vsub.s32 0, %v277
    %v279 = vrot.slane %v274, %v278
    %v281 = vpack.i.b16 %v249, %v249
    %v283 = vlaneseq
    %v284 = vshrl.u32 %v283, 7
    %v285 = vsub.s32 0, %v284
    %v286 = vrot.slane %v281, %v285
    %v288 = vpack.i.b16 %v250, %v250
    %v290 = vlaneseq
    %v291 = vshrl.u32 %v290, 7
    %v292 = vsub.s32 0, %v291
    %v293 = vrot.slane %v288, %v292
    %v295 = vpack.i.b16 %v251, %v251
    %v297 = vlaneseq
    %v298 = vshrl.u32 %v297, 7
    %v299 = vsub.s32 0, %v298
    %v300 = vrot.slane %v295, %v299
    %v302 = vpack.i.b16 %v252, %v252
    %v304 = vlaneseq
    %v305 = vshrl.u32 %v304, 7
    %v306 = vsub.s32 0, %v305
    %v307 = vrot.slane %v302, %v306
    %v309 = vpack.i.b16 %v253, %v253
    %v311 = vlaneseq
    %v312 = vshrl.u32 %v311, 7
    %v313 = vsub.s32 0, %v312
    %v314 = vrot.slane %v309, %v313
    %v316 = vpack.i.b16 %v254, %v254
    %v318 = vlaneseq
    %v319 = vshrl.u32 %v318, 7
    %v320 = vsub.s32 0, %v319
    %v321 = vrot.slane %v316, %v320
    %v323 = vpack.i.b16 %v255, %v255
    %v325 = vlaneseq
    %v326 = vshrl.u32 %v325, 7
    %v327 = vsub.s32 0, %v326
    %v328 = vrot.slane %v323, %v327
    %v329 = vadd.bf16 %v216, %v279
    %v330 = vadd.bf16 %v217, %v286
    %v331 = vadd.bf16 %v218, %v293
    %v332 = vadd.bf16 %v219, %v300
    %v333 = vadd.bf16 %v220, %v307
    %v334 = vadd.bf16 %v221, %v314
    %v335 = vadd.bf16 %v222, %v321
    %v336 = vadd.bf16 %v223, %v328
    %v337 = vmax.bf16 %v329, 0
    %v338 = vmax.bf16 %v330, 0
    %v339 = vmax.bf16 %v331, 0
    %v340 = vmax.bf16 %v332, 0
    %v341 = vmax.bf16 %v333, 0
    %v342 = vmax.bf16 %v334, 0
    %v343 = vmax.bf16 %v335, 0
    %v344 = vmax.bf16 %v336, 0
    %v346 = vlaneseq
    %v347 = vshrl.u32 %v346, 7
    %v348 = vsub.s32 0, %v347
    %v349 = vrot.slane %v272, %v348
    %v359 = vunpack.c.l.b16 %v337
    %v360 = vunpack.c.l.b16 %v338
    %v361 = vunpack.c.l.b16 %v339
    %v362 = vunpack.c.l.b16 %v340
    %v363 = vunpack.c.l.b16 %v341
    %v364 = vunpack.c.l.b16 %v342
    %v365 = vunpack.c.l.b16 %v343
    %v366 = vunpack.c.l.b16 %v344
    %v367 = vpack.c.b16 %v360, %v359
    %v368 = vpack.c.b16 %v362, %v361
    %v369 = vpack.c.b16 %v364, %v363
    %v370 = vpack.c.b16 %v366, %v365
    %v391 = vunpack.c.l.b16 %v256
    %v392 = vunpack.c.l.b16 %v257
    %v393 = vunpack.c.l.b16 %v258
    %v394 = vunpack.c.l.b16 %v259
    %v395 = vunpack.c.l.b16 %v260
    %v396 = vunpack.c.l.b16 %v261
    %v397 = vunpack.c.l.b16 %v262
    %v398 = vunpack.c.l.b16 %v263
    %v399 = vunpack.c.l.b16 %v264
    %v400 = vunpack.c.l.b16 %v265
    %v401 = vunpack.c.l.b16 %v266
    %v402 = vunpack.c.l.b16 %v267
    %v403 = vunpack.c.l.b16 %v268
    %v404 = vunpack.c.l.b16 %v269
    %v405 = vunpack.c.l.b16 %v270
    %v406 = vunpack.c.l.b16 %v271
    %v407 = vpack.c.b16 %v392, %v391
    %v408 = vpack.c.b16 %v394, %v393
    %v409 = vpack.c.b16 %v396, %v395
    %v410 = vpack.c.b16 %v398, %v397
    %v411 = vpack.c.b16 %v400, %v399
    %v412 = vpack.c.b16 %v402, %v401
    %v413 = vpack.c.b16 %v404, %v403
    %v414 = vpack.c.b16 %v406, %v405
    %423 = vmatprep.subr.bf16.mxu0 0
    %424 = vmatpush1.bf16.msra.mxu0 %v407
    %425 = vmatprep.subr.bf16.mxu0 0
    %426 = vmatpush1.bf16.msra.mxu0 %v408
    %427 = vmatprep.subr.bf16.mxu0 0
    %428 = vmatpush1.bf16.msra.mxu0 %v409
    %429 = vmatprep.subr.bf16.mxu0 0
    %430 = vmatpush1.bf16.msra.mxu0 %v410
    %431 = vmatprep.subr.bf16.mxu0 0
    %432 = vmatpush1.bf16.msra.mxu0 %v411
    %433 = vmatprep.subr.bf16.mxu0 0
    %434 = vmatpush1.bf16.msra.mxu0 %v412
    %435 = vmatprep.subr.bf16.mxu0 0
    %436 = vmatpush1.bf16.msra.mxu0 %v413
    %437 = vmatprep.subr.bf16.mxu0 0
    %438 = vmatpush1.bf16.msra.mxu0 %v414
    %439 = vmatprep.subr.bf16.mxu0 0
    %440 = vmatpush1.bf16.msra.mxu0 0
    %441 = vmatprep.subr.bf16.mxu0 0
    %442 = vmatpush1.bf16.msra.mxu0 0
    %443 = vmatprep.subr.bf16.mxu0 0
    %444 = vmatpush1.bf16.msra.mxu0 0
    %445 = vmatprep.subr.bf16.mxu0 0
    %446 = vmatpush1.bf16.msra.mxu0 0
    %447 = vmatprep.subr.bf16.mxu0 0
    %448 = vmatpush1.bf16.msra.mxu0 0
    %449 = vmatprep.subr.bf16.mxu0 0
    %450 = vmatpush1.bf16.msra.mxu0 0
    %451 = vmatprep.subr.bf16.mxu0 0
    %452 = vmatpush1.bf16.msra.mxu0 0
    %453 = vmatprep.subr.bf16.mxu0 0
    %454 = vmatpush1.bf16.msra.mxu0 0
    %455 = vmatprep.mubr.bf16.mxu0 0
    %456 = vmatmul.mubr.bf16.gmra.mrb[0].mxu0 %v367
    %v457 = vpop.f32.mrb[0].mxu0
    %v458 = vadd.f32 %v349, %v457
    %v459 = vpop.f32.mrb[0].mxu0
    %v460 = vpop.f32.mrb[0].mxu0
    %v461 = vadd.f32 %v349, %v460
    %v462 = vpop.f32.mrb[0].mxu0
    %463 = vmatprep.mubr.bf16.mxu0 0
    %464 = vmatmul.mubr.bf16.gmra.mrb[0].mxu0 %v368
    %v465 = vpop.f32.mrb[0].mxu0
    %v466 = vadd.f32 %v349, %v465
    %v467 = vpop.f32.mrb[0].mxu0
    %v468 = vpop.f32.mrb[0].mxu0
    %v469 = vadd.f32 %v349, %v468
    %v470 = vpop.f32.mrb[0].mxu0
    %471 = vmatprep.mubr.bf16.mxu0 0
    %472 = vmatmul.mubr.bf16.gmra.mrb[0].mxu0 %v369
    %v473 = vpop.f32.mrb[0].mxu0
    %v474 = vadd.f32 %v349, %v473
    %v475 = vpop.f32.mrb[0].mxu0
    %v476 = vpop.f32.mrb[0].mxu0
    %v477 = vadd.f32 %v349, %v476
    %v478 = vpop.f32.mrb[0].mxu0
    %479 = vmatprep.mubr.bf16.mxu0 0
    %480 = vmatmul.mubr.bf16.gmra.mrb[0].mxu0 %v370
    %v481 = vpop.f32.mrb[0].mxu0
    %v482 = vadd.f32 %v349, %v481
    %v483 = vpop.f32.mrb[0].mxu0
    %v484 = vpop.f32.mrb[0].mxu0
    %v485 = vadd.f32 %v349, %v484
    %v486 = vpop.f32.mrb[0].mxu0
    %487 = vdwg.mxu0
    %v488 = vmax.f32 %v458, 0.0
    %v489 = vmax.f32 %v461, 0.0
    %v490 = vmax.f32 %v466, 0.0
    %v491 = vmax.f32 %v469, 0.0
    %v492 = vmax.f32 %v474, 0.0
    %v493 = vmax.f32 %v477, 0.0
    %v494 = vmax.f32 %v482, 0.0
    %v495 = vmax.f32 %v485, 0.0
    %v496 = vrot.slane %v488, 4
    %v497 = vadd.f32 %v488, %v496
    %v498 = vrot.slane %v497, 2
    %v499 = vadd.f32 %v497, %v498
    %v500 = vrot.slane %v499, 1
    %v501 = vadd.f32 %v499, %v500
    %v502 = vrot.slane %v489, 4
    %v503 = vadd.f32 %v489, %v502
    %v504 = vrot.slane %v503, 2
    %v505 = vadd.f32 %v503, %v504
    %v506 = vrot.slane %v505, 1
    %v507 = vadd.f32 %v505, %v506
    %v508 = vrot.slane %v490, 4
    %v509 = vadd.f32 %v490, %v508
    %v510 = vrot.slane %v509, 2
    %v511 = vadd.f32 %v509, %v510
    %v512 = vrot.slane %v511, 1
    %v513 = vadd.f32 %v511, %v512
    %v514 = vrot.slane %v491, 4
    %v515 = vadd.f32 %v491, %v514
    %v516 = vrot.slane %v515, 2
    %v517 = vadd.f32 %v515, %v516
    %v518 = vrot.slane %v517, 1
    %v519 = vadd.f32 %v517, %v518
    %v520 = vrot.slane %v492, 4
    %v521 = vadd.f32 %v492, %v520
    %v522 = vrot.slane %v521, 2
    %v523 = vadd.f32 %v521, %v522
    %v524 = vrot.slane %v523, 1
    %v525 = vadd.f32 %v523, %v524
    %v526 = vrot.slane %v493, 4
    %v527 = vadd.f32 %v493, %v526
    %v528 = vrot.slane %v527, 2
    %v529 = vadd.f32 %v527, %v528
    %v530 = vrot.slane %v529, 1
    %v531 = vadd.f32 %v529, %v530
    %v532 = vrot.slane %v494, 4
    %v533 = vadd.f32 %v494, %v532
    %v534 = vrot.slane %v533, 2
    %v535 = vadd.f32 %v533, %v534
    %v536 = vrot.slane %v535, 1
    %v537 = vadd.f32 %v535, %v536
    %v538 = vrot.slane %v495, 4
    %v539 = vadd.f32 %v495, %v538
    %v540 = vrot.slane %v539, 2
    %v541 = vadd.f32 %v539, %v540
    %v542 = vrot.slane %v541, 1
    %v543 = vadd.f32 %v541, %v542
    %v544 = vadd.f32 %v501, 0.0
    %v545 = vadd.f32 %v507, 0.0
    %v546 = vadd.f32 %v513, 0.0
    %v547 = vadd.f32 %v519, 0.0
    %v548 = vadd.f32 %v525, 0.0
    %v549 = vadd.f32 %v531, 0.0
    %v550 = vadd.f32 %v537, 0.0
    %v551 = vadd.f32 %v543, 0.0
    %v552 = vshrl.u32 %v248, 16
    %v553 = vpack.i.b16 %v552, %v552
    %v555 = vlaneseq
    %v556 = vshrl.u32 %v555, 7
    %v557 = vsub.s32 0, %v556
    %v558 = vrot.slane %v553, %v557
    %v559 = vshrl.u32 %v249, 16
    %v560 = vpack.i.b16 %v559, %v559
    %v562 = vlaneseq
    %v563 = vshrl.u32 %v562, 7
    %v564 = vsub.s32 0, %v563
    %v565 = vrot.slane %v560, %v564
    %v566 = vshrl.u32 %v250, 16
    %v567 = vpack.i.b16 %v566, %v566
    %v569 = vlaneseq
    %v570 = vshrl.u32 %v569, 7
    %v571 = vsub.s32 0, %v570
    %v572 = vrot.slane %v567, %v571
    %v573 = vshrl.u32 %v251, 16
    %v574 = vpack.i.b16 %v573, %v573
    %v576 = vlaneseq
    %v577 = vshrl.u32 %v576, 7
    %v578 = vsub.s32 0, %v577
    %v579 = vrot.slane %v574, %v578
    %v580 = vshrl.u32 %v252, 16
    %v581 = vpack.i.b16 %v580, %v580
    %v583 = vlaneseq
    %v584 = vshrl.u32 %v583, 7
    %v585 = vsub.s32 0, %v584
    %v586 = vrot.slane %v581, %v585
    %v587 = vshrl.u32 %v253, 16
    %v588 = vpack.i.b16 %v587, %v587
    %v590 = vlaneseq
    %v591 = vshrl.u32 %v590, 7
    %v592 = vsub.s32 0, %v591
    %v593 = vrot.slane %v588, %v592
    %v594 = vshrl.u32 %v254, 16
    %v595 = vpack.i.b16 %v594, %v594
    %v597 = vlaneseq
    %v598 = vshrl.u32 %v597, 7
    %v599 = vsub.s32 0, %v598
    %v600 = vrot.slane %v595, %v599
    %v601 = vshrl.u32 %v255, 16
    %v602 = vpack.i.b16 %v601, %v601
    %v604 = vlaneseq
    %v605 = vshrl.u32 %v604, 7
    %v606 = vsub.s32 0, %v605
    %v607 = vrot.slane %v602, %v606
    %v608 = vadd.bf16 %v216, %v558
    %v609 = vadd.bf16 %v217, %v565
    %v610 = vadd.bf16 %v218, %v572
    %v611 = vadd.bf16 %v219, %v579
    %v612 = vadd.bf16 %v220, %v586
    %v613 = vadd.bf16 %v221, %v593
    %v614 = vadd.bf16 %v222, %v600
    %v615 = vadd.bf16 %v223, %v607
    %v616 = vmax.bf16 %v608, 0
    %v617 = vmax.bf16 %v609, 0
    %v618 = vmax.bf16 %v610, 0
    %v619 = vmax.bf16 %v611, 0
    %v620 = vmax.bf16 %v612, 0
    %v621 = vmax.bf16 %v613, 0
    %v622 = vmax.bf16 %v614, 0
    %v623 = vmax.bf16 %v615, 0
    %v632 = vunpack.c.l.b16 %v616
    %v633 = vunpack.c.l.b16 %v617
    %v634 = vunpack.c.l.b16 %v618
    %v635 = vunpack.c.l.b16 %v619
    %v636 = vunpack.c.l.b16 %v620
    %v637 = vunpack.c.l.b16 %v621
    %v638 = vunpack.c.l.b16 %v622
    %v639 = vunpack.c.l.b16 %v623
    %v640 = vpack.c.b16 %v633, %v632
    %v641 = vpack.c.b16 %v635, %v634
    %v642 = vpack.c.b16 %v637, %v636
    %v643 = vpack.c.b16 %v639, %v638
    %648 = vmatprep.subr.bf16.mxu0 0
    %649 = vmatpush1.bf16.msra.mxu0 %v407
    %650 = vmatprep.subr.bf16.mxu0 0
    %651 = vmatpush1.bf16.msra.mxu0 %v408
    %652 = vmatprep.subr.bf16.mxu0 0
    %653 = vmatpush1.bf16.msra.mxu0 %v409
    %654 = vmatprep.subr.bf16.mxu0 0
    %655 = vmatpush1.bf16.msra.mxu0 %v410
    %656 = vmatprep.subr.bf16.mxu0 0
    %657 = vmatpush1.bf16.msra.mxu0 %v411
    %658 = vmatprep.subr.bf16.mxu0 0
    %659 = vmatpush1.bf16.msra.mxu0 %v412
    %660 = vmatprep.subr.bf16.mxu0 0
    %661 = vmatpush1.bf16.msra.mxu0 %v413
    %662 = vmatprep.subr.bf16.mxu0 0
    %663 = vmatpush1.bf16.msra.mxu0 %v414
    %664 = vmatprep.subr.bf16.mxu0 0
    %665 = vmatpush1.bf16.msra.mxu0 0
    %666 = vmatprep.subr.bf16.mxu0 0
    %667 = vmatpush1.bf16.msra.mxu0 0
    %668 = vmatprep.subr.bf16.mxu0 0
    %669 = vmatpush1.bf16.msra.mxu0 0
    %670 = vmatprep.subr.bf16.mxu0 0
    %671 = vmatpush1.bf16.msra.mxu0 0
    %672 = vmatprep.subr.bf16.mxu0 0
    %673 = vmatpush1.bf16.msra.mxu0 0
    %674 = vmatprep.subr.bf16.mxu0 0
    %675 = vmatpush1.bf16.msra.mxu0 0
    %676 = vmatprep.subr.bf16.mxu0 0
    %677 = vmatpush1.bf16.msra.mxu0 0
    %678 = vmatprep.subr.bf16.mxu0 0
    %679 = vmatpush1.bf16.msra.mxu0 0
    %680 = vmatprep.mubr.bf16.mxu0 0
    %681 = vmatmul.mubr.bf16.gmra.mrb[0].mxu0 %v640
    %v682 = vpop.f32.mrb[0].mxu0
    %v683 = vadd.f32 %v349, %v682
    %v684 = vpop.f32.mrb[0].mxu0
    %v685 = vpop.f32.mrb[0].mxu0
    %v686 = vadd.f32 %v349, %v685
    %v687 = vpop.f32.mrb[0].mxu0
    %688 = vmatprep.mubr.bf16.mxu0 0
    %689 = vmatmul.mubr.bf16.gmra.mrb[0].mxu0 %v641
    %v690 = vpop.f32.mrb[0].mxu0
    %v691 = vadd.f32 %v349, %v690
    %v692 = vpop.f32.mrb[0].mxu0
    %v693 = vpop.f32.mrb[0].mxu0
    %v694 = vadd.f32 %v349, %v693
    %v695 = vpop.f32.mrb[0].mxu0
    %696 = vmatprep.mubr.bf16.mxu0 0
    %697 = vmatmul.mubr.bf16.gmra.mrb[0].mxu0 %v642
    %v698 = vpop.f32.mrb[0].mxu0
    %v699 = vadd.f32 %v349, %v698
    %v700 = vpop.f32.mrb[0].mxu0
    %v701 = vpop.f32.mrb[0].mxu0
    %v702 = vadd.f32 %v349, %v701
    %v703 = vpop.f32.mrb[0].mxu0
    %704 = vmatprep.mubr.bf16.mxu0 0
    %705 = vmatmul.mubr.bf16.gmra.mrb[0].mxu0 %v643
    %v706 = vpop.f32.mrb[0].mxu0
    %v707 = vadd.f32 %v349, %v706
    %v708 = vpop.f32.mrb[0].mxu0
    %v709 = vpop.f32.mrb[0].mxu0
    %v710 = vadd.f32 %v349, %v709
    %v711 = vpop.f32.mrb[0].mxu0
    %712 = vdwg.mxu0
    %v713 = vmax.f32 %v683, 0.0
    %v714 = vmax.f32 %v686, 0.0
    %v715 = vmax.f32 %v691, 0.0
    %v716 = vmax.f32 %v694, 0.0
    %v717 = vmax.f32 %v699, 0.0
    %v718 = vmax.f32 %v702, 0.0
    %v719 = vmax.f32 %v707, 0.0
    %v720 = vmax.f32 %v710, 0.0
    %v721 = vrot.slane %v713, 4
    %v722 = vadd.f32 %v713, %v721
    %v723 = vrot.slane %v722, 2
    %v724 = vadd.f32 %v722, %v723
    %v725 = vrot.slane %v724, 1
    %v726 = vadd.f32 %v724, %v725
    %v727 = vrot.slane %v714, 4
    %v728 = vadd.f32 %v714, %v727
    %v729 = vrot.slane %v728, 2
    %v730 = vadd.f32 %v728, %v729
    %v731 = vrot.slane %v730, 1
    %v732 = vadd.f32 %v730, %v731
    %v733 = vrot.slane %v715, 4
    %v734 = vadd.f32 %v715, %v733
    %v735 = vrot.slane %v734, 2
    %v736 = vadd.f32 %v734, %v735
    %v737 = vrot.slane %v736, 1
    %v738 = vadd.f32 %v736, %v737
    %v739 = vrot.slane %v716, 4
    %v740 = vadd.f32 %v716, %v739
    %v741 = vrot.slane %v740, 2
    %v742 = vadd.f32 %v740, %v741
    %v743 = vrot.slane %v742, 1
    %v744 = vadd.f32 %v742, %v743
    %v745 = vrot.slane %v717, 4
    %v746 = vadd.f32 %v717, %v745
    %v747 = vrot.slane %v746, 2
    %v748 = vadd.f32 %v746, %v747
    %v749 = vrot.slane %v748, 1
    %v750 = vadd.f32 %v748, %v749
    %v751 = vrot.slane %v718, 4
    %v752 = vadd.f32 %v718, %v751
    %v753 = vrot.slane %v752, 2
    %v754 = vadd.f32 %v752, %v753
    %v755 = vrot.slane %v754, 1
    %v756 = vadd.f32 %v754, %v755
    %v757 = vrot.slane %v719, 4
    %v758 = vadd.f32 %v719, %v757
    %v759 = vrot.slane %v758, 2
    %v760 = vadd.f32 %v758, %v759
    %v761 = vrot.slane %v760, 1
    %v762 = vadd.f32 %v760, %v761
    %v763 = vrot.slane %v720, 4
    %v764 = vadd.f32 %v720, %v763
    %v765 = vrot.slane %v764, 2
    %v766 = vadd.f32 %v764, %v765
    %v767 = vrot.slane %v766, 1
    %v768 = vadd.f32 %v766, %v767
    %v769 = vadd.f32 %v544, %v726
    %v770 = vadd.f32 %v545, %v732
    %v771 = vadd.f32 %v546, %v738
    %v772 = vadd.f32 %v547, %v744
    %v773 = vadd.f32 %v548, %v750
    %v774 = vadd.f32 %v549, %v756
    %v775 = vadd.f32 %v550, %v762
    %v776 = vadd.f32 %v551, %v768
    %v777 = vlaneseq
    %v778 = vshrl.u32 %v777, 7
    %v779 = vsub.s32 1, %v778
    %v780 = vrot.slane %v274, %v779
    %v781 = vlaneseq
    %v782 = vshrl.u32 %v781, 7
    %v783 = vsub.s32 1, %v782
    %v784 = vrot.slane %v281, %v783
    %v785 = vlaneseq
    %v786 = vshrl.u32 %v785, 7
    %v787 = vsub.s32 1, %v786
    %v788 = vrot.slane %v288, %v787
    %v789 = vlaneseq
    %v790 = vshrl.u32 %v789, 7
    %v791 = vsub.s32 1, %v790
    %v792 = vrot.slane %v295, %v791
    %v793 = vlaneseq
    %v794 = vshrl.u32 %v793, 7
    %v795 = vsub.s32 1, %v794
    %v796 = vrot.slane %v302, %v795
    %v797 = vlaneseq
    %v798 = vshrl.u32 %v797, 7
    %v799 = vsub.s32 1, %v798
    %v800 = vrot.slane %v309, %v799
    %v801 = vlaneseq
    %v802 = vshrl.u32 %v801, 7
    %v803 = vsub.s32 1, %v802
    %v804 = vrot.slane %v316, %v803
    %v805 = vlaneseq
    %v806 = vshrl.u32 %v805, 7
    %v807 = vsub.s32 1, %v806
    %v808 = vrot.slane %v323, %v807
    %v809 = vadd.bf16 %v216, %v780
    %v810 = vadd.bf16 %v217, %v784
    %v811 = vadd.bf16 %v218, %v788
    %v812 = vadd.bf16 %v219, %v792
    %v813 = vadd.bf16 %v220, %v796
    %v814 = vadd.bf16 %v221, %v800
    %v815 = vadd.bf16 %v222, %v804
    %v816 = vadd.bf16 %v223, %v808
    %v817 = vmax.bf16 %v809, 0
    %v818 = vmax.bf16 %v810, 0
    %v819 = vmax.bf16 %v811, 0
    %v820 = vmax.bf16 %v812, 0
    %v821 = vmax.bf16 %v813, 0
    %v822 = vmax.bf16 %v814, 0
    %v823 = vmax.bf16 %v815, 0
    %v824 = vmax.bf16 %v816, 0
    %v833 = vunpack.c.l.b16 %v817
    %v834 = vunpack.c.l.b16 %v818
    %v835 = vunpack.c.l.b16 %v819
    %v836 = vunpack.c.l.b16 %v820
    %v837 = vunpack.c.l.b16 %v821
    %v838 = vunpack.c.l.b16 %v822
    %v839 = vunpack.c.l.b16 %v823
    %v840 = vunpack.c.l.b16 %v824
    %v841 = vpack.c.b16 %v834, %v833
    %v842 = vpack.c.b16 %v836, %v835
    %v843 = vpack.c.b16 %v838, %v837
    %v844 = vpack.c.b16 %v840, %v839
    %849 = vmatprep.subr.bf16.mxu0 0
    %850 = vmatpush1.bf16.msra.mxu0 %v407
    %851 = vmatprep.subr.bf16.mxu0 0
    %852 = vmatpush1.bf16.msra.mxu0 %v408
    %853 = vmatprep.subr.bf16.mxu0 0
    %854 = vmatpush1.bf16.msra.mxu0 %v409
    %855 = vmatprep.subr.bf16.mxu0 0
    %856 = vmatpush1.bf16.msra.mxu0 %v410
    %857 = vmatprep.subr.bf16.mxu0 0
    %858 = vmatpush1.bf16.msra.mxu0 %v411
    %859 = vmatprep.subr.bf16.mxu0 0
    %860 = vmatpush1.bf16.msra.mxu0 %v412
    %861 = vmatprep.subr.bf16.mxu0 0
    %862 = vmatpush1.bf16.msra.mxu0 %v413
    %863 = vmatprep.subr.bf16.mxu0 0
    %864 = vmatpush1.bf16.msra.mxu0 %v414
    %865 = vmatprep.subr.bf16.mxu0 0
    %866 = vmatpush1.bf16.msra.mxu0 0
    %867 = vmatprep.subr.bf16.mxu0 0
    %868 = vmatpush1.bf16.msra.mxu0 0
    %869 = vmatprep.subr.bf16.mxu0 0
    %870 = vmatpush1.bf16.msra.mxu0 0
    %871 = vmatprep.subr.bf16.mxu0 0
    %872 = vmatpush1.bf16.msra.mxu0 0
    %873 = vmatprep.subr.bf16.mxu0 0
    %874 = vmatpush1.bf16.msra.mxu0 0
    %875 = vmatprep.subr.bf16.mxu0 0
    %876 = vmatpush1.bf16.msra.mxu0 0
    %877 = vmatprep.subr.bf16.mxu0 0
    %878 = vmatpush1.bf16.msra.mxu0 0
    %879 = vmatprep.subr.bf16.mxu0 0
    %880 = vmatpush1.bf16.msra.mxu0 0
    %881 = vmatprep.mubr.bf16.mxu0 0
    %882 = vmatmul.mubr.bf16.gmra.mrb[0].mxu0 %v841
    %v883 = vpop.f32.mrb[0].mxu0
    %v884 = vadd.f32 %v349, %v883
    %v885 = vpop.f32.mrb[0].mxu0
    %v886 = vpop.f32.mrb[0].mxu0
    %v887 = vadd.f32 %v349, %v886
    %v888 = vpop.f32.mrb[0].mxu0
    %889 = vmatprep.mubr.bf16.mxu0 0
    %890 = vmatmul.mubr.bf16.gmra.mrb[0].mxu0 %v842
    %v891 = vpop.f32.mrb[0].mxu0
    %v892 = vadd.f32 %v349, %v891
    %v893 = vpop.f32.mrb[0].mxu0
    %v894 = vpop.f32.mrb[0].mxu0
    %v895 = vadd.f32 %v349, %v894
    %v896 = vpop.f32.mrb[0].mxu0
    %897 = vmatprep.mubr.bf16.mxu0 0
    %898 = vmatmul.mubr.bf16.gmra.mrb[0].mxu0 %v843
    %v899 = vpop.f32.mrb[0].mxu0
    %v900 = vadd.f32 %v349, %v899
    %v901 = vpop.f32.mrb[0].mxu0
    %v902 = vpop.f32.mrb[0].mxu0
    %v903 = vadd.f32 %v349, %v902
    %v904 = vpop.f32.mrb[0].mxu0
    %905 = vmatprep.mubr.bf16.mxu0 0
    %906 = vmatmul.mubr.bf16.gmra.mrb[0].mxu0 %v844
    %v907 = vpop.f32.mrb[0].mxu0
    %v908 = vadd.f32 %v349, %v907
    %v909 = vpop.f32.mrb[0].mxu0
    %v910 = vpop.f32.mrb[0].mxu0
    %v911 = vadd.f32 %v349, %v910
    %v912 = vpop.f32.mrb[0].mxu0
    %913 = vdwg.mxu0
    %v914 = vmax.f32 %v884, 0.0
    %v915 = vmax.f32 %v887, 0.0
    %v916 = vmax.f32 %v892, 0.0
    %v917 = vmax.f32 %v895, 0.0
    %v918 = vmax.f32 %v900, 0.0
    %v919 = vmax.f32 %v903, 0.0
    %v920 = vmax.f32 %v908, 0.0
    %v921 = vmax.f32 %v911, 0.0
    %v922 = vrot.slane %v914, 4
    %v923 = vadd.f32 %v914, %v922
    %v924 = vrot.slane %v923, 2
    %v925 = vadd.f32 %v923, %v924
    %v926 = vrot.slane %v925, 1
    %v927 = vadd.f32 %v925, %v926
    %v928 = vrot.slane %v915, 4
    %v929 = vadd.f32 %v915, %v928
    %v930 = vrot.slane %v929, 2
    %v931 = vadd.f32 %v929, %v930
    %v932 = vrot.slane %v931, 1
    %v933 = vadd.f32 %v931, %v932
    %v934 = vrot.slane %v916, 4
    %v935 = vadd.f32 %v916, %v934
    %v936 = vrot.slane %v935, 2
    %v937 = vadd.f32 %v935, %v936
    %v938 = vrot.slane %v937, 1
    %v939 = vadd.f32 %v937, %v938
    %v940 = vrot.slane %v917, 4
    %v941 = vadd.f32 %v917, %v940
    %v942 = vrot.slane %v941, 2
    %v943 = vadd.f32 %v941, %v942
    %v944 = vrot.slane %v943, 1
    %v945 = vadd.f32 %v943, %v944
    %v946 = vrot.slane %v918, 4
    %v947 = vadd.f32 %v918, %v946
    %v948 = vrot.slane %v947, 2
    %v949 = vadd.f32 %v947, %v948
    %v950 = vrot.slane %v949, 1
    %v951 = vadd.f32 %v949, %v950
    %v952 = vrot.slane %v919, 4
    %v953 = vadd.f32 %v919, %v952
    %v954 = vrot.slane %v953, 2
    %v955 = vadd.f32 %v953, %v954
    %v956 = vrot.slane %v955, 1
    %v957 = vadd.f32 %v955, %v956
    %v958 = vrot.slane %v920, 4
    %v959 = vadd.f32 %v920, %v958
    %v960 = vrot.slane %v959, 2
    %v961 = vadd.f32 %v959, %v960
    %v962 = vrot.slane %v961, 1
    %v963 = vadd.f32 %v961, %v962
    %v964 = vrot.slane %v921, 4
    %v965 = vadd.f32 %v921, %v964
    %v966 = vrot.slane %v965, 2
    %v967 = vadd.f32 %v965, %v966
    %v968 = vrot.slane %v967, 1
    %v969 = vadd.f32 %v967, %v968
    %v970 = vadd.f32 %v769, %v927
    %v971 = vadd.f32 %v770, %v933
    %v972 = vadd.f32 %v771, %v939
    %v973 = vadd.f32 %v772, %v945
    %v974 = vadd.f32 %v773, %v951
    %v975 = vadd.f32 %v774, %v957
    %v976 = vadd.f32 %v775, %v963
    %v977 = vadd.f32 %v776, %v969
    %v978 = vlaneseq
    %v979 = vshrl.u32 %v978, 7
    %v980 = vsub.s32 1, %v979
    %v981 = vrot.slane %v553, %v980
    %v982 = vlaneseq
    %v983 = vshrl.u32 %v982, 7
    %v984 = vsub.s32 1, %v983
    %v985 = vrot.slane %v560, %v984
    %v986 = vlaneseq
    %v987 = vshrl.u32 %v986, 7
    %v988 = vsub.s32 1, %v987
    %v989 = vrot.slane %v567, %v988
    %v990 = vlaneseq
    %v991 = vshrl.u32 %v990, 7
    %v992 = vsub.s32 1, %v991
    %v993 = vrot.slane %v574, %v992
    %v994 = vlaneseq
    %v995 = vshrl.u32 %v994, 7
    %v996 = vsub.s32 1, %v995
    %v997 = vrot.slane %v581, %v996
    %v998 = vlaneseq
    %v999 = vshrl.u32 %v998, 7
    %v1000 = vsub.s32 1, %v999
    %v1001 = vrot.slane %v588, %v1000
    %v1002 = vlaneseq
    %v1003 = vshrl.u32 %v1002, 7
    %v1004 = vsub.s32 1, %v1003
    %v1005 = vrot.slane %v595, %v1004
    %v1006 = vlaneseq
    %v1007 = vshrl.u32 %v1006, 7
    %v1008 = vsub.s32 1, %v1007
    %v1009 = vrot.slane %v602, %v1008
    %v1010 = vadd.bf16 %v216, %v981
    %v1011 = vadd.bf16 %v217, %v985
    %v1012 = vadd.bf16 %v218, %v989
    %v1013 = vadd.bf16 %v219, %v993
    %v1014 = vadd.bf16 %v220, %v997
    %v1015 = vadd.bf16 %v221, %v1001
    %v1016 = vadd.bf16 %v222, %v1005
    %v1017 = vadd.bf16 %v223, %v1009
    %v1018 = vmax.bf16 %v1010, 0
    %v1019 = vmax.bf16 %v1011, 0
    %v1020 = vmax.bf16 %v1012, 0
    %v1021 = vmax.bf16 %v1013, 0
    %v1022 = vmax.bf16 %v1014, 0
    %v1023 = vmax.bf16 %v1015, 0
    %v1024 = vmax.bf16 %v1016, 0
    %v1025 = vmax.bf16 %v1017, 0
    %v1034 = vunpack.c.l.b16 %v1018
    %v1035 = vunpack.c.l.b16 %v1019
    %v1036 = vunpack.c.l.b16 %v1020
    %v1037 = vunpack.c.l.b16 %v1021
    %v1038 = vunpack.c.l.b16 %v1022
    %v1039 = vunpack.c.l.b16 %v1023
    %v1040 = vunpack.c.l.b16 %v1024
    %v1041 = vunpack.c.l.b16 %v1025
    %v1042 = vpack.c.b16 %v1035, %v1034
    %v1043 = vpack.c.b16 %v1037, %v1036
    %v1044 = vpack.c.b16 %v1039, %v1038
    %v1045 = vpack.c.b16 %v1041, %v1040
    %1050 = vmatprep.subr.bf16.mxu0 0
    %1051 = vmatpush1.bf16.msra.mxu0 %v407
    %1052 = vmatprep.subr.bf16.mxu0 0
    %1053 = vmatpush1.bf16.msra.mxu0 %v408
    %1054 = vmatprep.subr.bf16.mxu0 0
    %1055 = vmatpush1.bf16.msra.mxu0 %v409
    %1056 = vmatprep.subr.bf16.mxu0 0
    %1057 = vmatpush1.bf16.msra.mxu0 %v410
    %1058 = vmatprep.subr.bf16.mxu0 0
    %1059 = vmatpush1.bf16.msra.mxu0 %v411
    %1060 = vmatprep.subr.bf16.mxu0 0
    %1061 = vmatpush1.bf16.msra.mxu0 %v412
    %1062 = vmatprep.subr.bf16.mxu0 0
    %1063 = vmatpush1.bf16.msra.mxu0 %v413
    %1064 = vmatprep.subr.bf16.mxu0 0
    %1065 = vmatpush1.bf16.msra.mxu0 %v414
    %1066 = vmatprep.subr.bf16.mxu0 0
    %1067 = vmatpush1.bf16.msra.mxu0 0
    %1068 = vmatprep.subr.bf16.mxu0 0
    %1069 = vmatpush1.bf16.msra.mxu0 0
    %1070 = vmatprep.subr.bf16.mxu0 0
    %1071 = vmatpush1.bf16.msra.mxu0 0
    %1072 = vmatprep.subr.bf16.mxu0 0
    %1073 = vmatpush1.bf16.msra.mxu0 0
    %1074 = vmatprep.subr.bf16.mxu0 0
    %1075 = vmatpush1.bf16.msra.mxu0 0
    %1076 = vmatprep.subr.bf16.mxu0 0
    %1077 = vmatpush1.bf16.msra.mxu0 0
    %1078 = vmatprep.subr.bf16.mxu0 0
    %1079 = vmatpush1.bf16.msra.mxu0 0
    %1080 = vmatprep.subr.bf16.mxu0 0
    %1081 = vmatpush1.bf16.msra.mxu0 0
    %1082 = vmatprep.mubr.bf16.mxu0 0
    %1083 = vmatmul.mubr.bf16.gmra.mrb[0].mxu0 %v1042
    %v1084 = vpop.f32.mrb[0].mxu0
    %v1085 = vadd.f32 %v349, %v1084
    %v1086 = vpop.f32.mrb[0].mxu0
    %v1087 = vpop.f32.mrb[0].mxu0
    %v1088 = vadd.f32 %v349, %v1087
    %v1089 = vpop.f32.mrb[0].mxu0
    %1090 = vmatprep.mubr.bf16.mxu0 0
    %1091 = vmatmul.mubr.bf16.gmra.mrb[0].mxu0 %v1043
    %v1092 = vpop.f32.mrb[0].mxu0
    %v1093 = vadd.f32 %v349, %v1092
    %v1094 = vpop.f32.mrb[0].mxu0
    %v1095 = vpop.f32.mrb[0].mxu0
    %v1096 = vadd.f32 %v349, %v1095
    %v1097 = vpop.f32.mrb[0].mxu0
    %1098 = vmatprep.mubr.bf16.mxu0 0
    %1099 = vmatmul.mubr.bf16.gmra.mrb[0].mxu0 %v1044
    %v1100 = vpop.f32.mrb[0].mxu0
    %v1101 = vadd.f32 %v349, %v1100
    %v1102 = vpop.f32.mrb[0].mxu0
    %v1103 = vpop.f32.mrb[0].mxu0
    %v1104 = vadd.f32 %v349, %v1103
    %v1105 = vpop.f32.mrb[0].mxu0
    %1106 = vmatprep.mubr.bf16.mxu0 0
    %1107 = vmatmul.mubr.bf16.gmra.mrb[0].mxu0 %v1045
    %v1108 = vpop.f32.mrb[0].mxu0
    %v1109 = vadd.f32 %v349, %v1108
    %v1110 = vpop.f32.mrb[0].mxu0
    %v1111 = vpop.f32.mrb[0].mxu0
    %v1112 = vadd.f32 %v349, %v1111
    %v1113 = vpop.f32.mrb[0].mxu0
    %1114 = vdwg.mxu0
    %v1115 = vmax.f32 %v1085, 0.0
    %v1116 = vmax.f32 %v1088, 0.0
    %v1117 = vmax.f32 %v1093, 0.0
    %v1118 = vmax.f32 %v1096, 0.0
    %v1119 = vmax.f32 %v1101, 0.0
    %v1120 = vmax.f32 %v1104, 0.0
    %v1121 = vmax.f32 %v1109, 0.0
    %v1122 = vmax.f32 %v1112, 0.0
    %v1123 = vrot.slane %v1115, 4
    %v1124 = vadd.f32 %v1115, %v1123
    %v1125 = vrot.slane %v1124, 2
    %v1126 = vadd.f32 %v1124, %v1125
    %v1127 = vrot.slane %v1126, 1
    %v1128 = vadd.f32 %v1126, %v1127
    %v1129 = vrot.slane %v1116, 4
    %v1130 = vadd.f32 %v1116, %v1129
    %v1131 = vrot.slane %v1130, 2
    %v1132 = vadd.f32 %v1130, %v1131
    %v1133 = vrot.slane %v1132, 1
    %v1134 = vadd.f32 %v1132, %v1133
    %v1135 = vrot.slane %v1117, 4
    %v1136 = vadd.f32 %v1117, %v1135
    %v1137 = vrot.slane %v1136, 2
    %v1138 = vadd.f32 %v1136, %v1137
    %v1139 = vrot.slane %v1138, 1
    %v1140 = vadd.f32 %v1138, %v1139
    %v1141 = vrot.slane %v1118, 4
    %v1142 = vadd.f32 %v1118, %v1141
    %v1143 = vrot.slane %v1142, 2
    %v1144 = vadd.f32 %v1142, %v1143
    %v1145 = vrot.slane %v1144, 1
    %v1146 = vadd.f32 %v1144, %v1145
    %v1147 = vrot.slane %v1119, 4
    %v1148 = vadd.f32 %v1119, %v1147
    %v1149 = vrot.slane %v1148, 2
    %v1150 = vadd.f32 %v1148, %v1149
    %v1151 = vrot.slane %v1150, 1
    %v1152 = vadd.f32 %v1150, %v1151
    %v1153 = vrot.slane %v1120, 4
    %v1154 = vadd.f32 %v1120, %v1153
    %v1155 = vrot.slane %v1154, 2
    %v1156 = vadd.f32 %v1154, %v1155
    %v1157 = vrot.slane %v1156, 1
    %v1158 = vadd.f32 %v1156, %v1157
    %v1159 = vrot.slane %v1121, 4
    %v1160 = vadd.f32 %v1121, %v1159
    %v1161 = vrot.slane %v1160, 2
    %v1162 = vadd.f32 %v1160, %v1161
    %v1163 = vrot.slane %v1162, 1
    %v1164 = vadd.f32 %v1162, %v1163
    %v1165 = vrot.slane %v1122, 4
    %v1166 = vadd.f32 %v1122, %v1165
    %v1167 = vrot.slane %v1166, 2
    %v1168 = vadd.f32 %v1166, %v1167
    %v1169 = vrot.slane %v1168, 1
    %v1170 = vadd.f32 %v1168, %v1169
    %v1171 = vadd.f32 %v970, %v1128
    %v1172 = vadd.f32 %v971, %v1134
    %v1173 = vadd.f32 %v972, %v1140
    %v1174 = vadd.f32 %v973, %v1146
    %v1175 = vadd.f32 %v974, %v1152
    %v1176 = vadd.f32 %v975, %v1158
    %v1177 = vadd.f32 %v976, %v1164
    %v1178 = vadd.f32 %v977, %v1170
    %v1179 = vlaneseq
    %v1180 = vshrl.u32 %v1179, 7
    %v1181 = vsub.s32 2, %v1180
    %v1182 = vrot.slane %v274, %v1181
    %v1183 = vlaneseq
    %v1184 = vshrl.u32 %v1183, 7
    %v1185 = vsub.s32 2, %v1184
    %v1186 = vrot.slane %v281, %v1185
    %v1187 = vlaneseq
    %v1188 = vshrl.u32 %v1187, 7
    %v1189 = vsub.s32 2, %v1188
    %v1190 = vrot.slane %v288, %v1189
    %v1191 = vlaneseq
    %v1192 = vshrl.u32 %v1191, 7
    %v1193 = vsub.s32 2, %v1192
    %v1194 = vrot.slane %v295, %v1193
    %v1195 = vlaneseq
    %v1196 = vshrl.u32 %v1195, 7
    %v1197 = vsub.s32 2, %v1196
    %v1198 = vrot.slane %v302, %v1197
    %v1199 = vlaneseq
    %v1200 = vshrl.u32 %v1199, 7
    %v1201 = vsub.s32 2, %v1200
    %v1202 = vrot.slane %v309, %v1201
    %v1203 = vlaneseq
    %v1204 = vshrl.u32 %v1203, 7
    %v1205 = vsub.s32 2, %v1204
    %v1206 = vrot.slane %v316, %v1205
    %v1207 = vlaneseq
    %v1208 = vshrl.u32 %v1207, 7
    %v1209 = vsub.s32 2, %v1208
    %v1210 = vrot.slane %v323, %v1209
    %v1211 = vadd.bf16 %v216, %v1182
    %v1212 = vadd.bf16 %v217, %v1186
    %v1213 = vadd.bf16 %v218, %v1190
    %v1214 = vadd.bf16 %v219, %v1194
    %v1215 = vadd.bf16 %v220, %v1198
    %v1216 = vadd.bf16 %v221, %v1202
    %v1217 = vadd.bf16 %v222, %v1206
    %v1218 = vadd.bf16 %v223, %v1210
    %v1219 = vmax.bf16 %v1211, 0
    %v1220 = vmax.bf16 %v1212, 0
    %v1221 = vmax.bf16 %v1213, 0
    %v1222 = vmax.bf16 %v1214, 0
    %v1223 = vmax.bf16 %v1215, 0
    %v1224 = vmax.bf16 %v1216, 0
    %v1225 = vmax.bf16 %v1217, 0
    %v1226 = vmax.bf16 %v1218, 0
    %v1235 = vunpack.c.l.b16 %v1219
    %v1236 = vunpack.c.l.b16 %v1220
    %v1237 = vunpack.c.l.b16 %v1221
    %v1238 = vunpack.c.l.b16 %v1222
    %v1239 = vunpack.c.l.b16 %v1223
    %v1240 = vunpack.c.l.b16 %v1224
    %v1241 = vunpack.c.l.b16 %v1225
    %v1242 = vunpack.c.l.b16 %v1226
    %v1243 = vpack.c.b16 %v1236, %v1235
    %v1244 = vpack.c.b16 %v1238, %v1237
    %v1245 = vpack.c.b16 %v1240, %v1239
    %v1246 = vpack.c.b16 %v1242, %v1241
    %1251 = vmatprep.subr.bf16.mxu0 0
    %1252 = vmatpush1.bf16.msra.mxu0 %v407
    %1253 = vmatprep.subr.bf16.mxu0 0
    %1254 = vmatpush1.bf16.msra.mxu0 %v408
    %1255 = vmatprep.subr.bf16.mxu0 0
    %1256 = vmatpush1.bf16.msra.mxu0 %v409
    %1257 = vmatprep.subr.bf16.mxu0 0
    %1258 = vmatpush1.bf16.msra.mxu0 %v410
    %1259 = vmatprep.subr.bf16.mxu0 0
    %1260 = vmatpush1.bf16.msra.mxu0 %v411
    %1261 = vmatprep.subr.bf16.mxu0 0
    %1262 = vmatpush1.bf16.msra.mxu0 %v412
    %1263 = vmatprep.subr.bf16.mxu0 0
    %1264 = vmatpush1.bf16.msra.mxu0 %v413
    %1265 = vmatprep.subr.bf16.mxu0 0
    %1266 = vmatpush1.bf16.msra.mxu0 %v414
    %1267 = vmatprep.subr.bf16.mxu0 0
    %1268 = vmatpush1.bf16.msra.mxu0 0
    %1269 = vmatprep.subr.bf16.mxu0 0
    %1270 = vmatpush1.bf16.msra.mxu0 0
    %1271 = vmatprep.subr.bf16.mxu0 0
    %1272 = vmatpush1.bf16.msra.mxu0 0
    %1273 = vmatprep.subr.bf16.mxu0 0
    %1274 = vmatpush1.bf16.msra.mxu0 0
    %1275 = vmatprep.subr.bf16.mxu0 0
    %1276 = vmatpush1.bf16.msra.mxu0 0
    %1277 = vmatprep.subr.bf16.mxu0 0
    %1278 = vmatpush1.bf16.msra.mxu0 0
    %1279 = vmatprep.subr.bf16.mxu0 0
    %1280 = vmatpush1.bf16.msra.mxu0 0
    %1281 = vmatprep.subr.bf16.mxu0 0
    %1282 = vmatpush1.bf16.msra.mxu0 0
    %1283 = vmatprep.mubr.bf16.mxu0 0
    %1284 = vmatmul.mubr.bf16.gmra.mrb[0].mxu0 %v1243
    %v1285 = vpop.f32.mrb[0].mxu0
    %v1286 = vadd.f32 %v349, %v1285
    %v1287 = vpop.f32.mrb[0].mxu0
    %v1288 = vpop.f32.mrb[0].mxu0
    %v1289 = vadd.f32 %v349, %v1288
    %v1290 = vpop.f32.mrb[0].mxu0
    %1291 = vmatprep.mubr.bf16.mxu0 0
    %1292 = vmatmul.mubr.bf16.gmra.mrb[0].mxu0 %v1244
    %v1293 = vpop.f32.mrb[0].mxu0
    %v1294 = vadd.f32 %v349, %v1293
    %v1295 = vpop.f32.mrb[0].mxu0
    %v1296 = vpop.f32.mrb[0].mxu0
    %v1297 = vadd.f32 %v349, %v1296
    %v1298 = vpop.f32.mrb[0].mxu0
    %1299 = vmatprep.mubr.bf16.mxu0 0
    %1300 = vmatmul.mubr.bf16.gmra.mrb[0].mxu0 %v1245
    %v1301 = vpop.f32.mrb[0].mxu0
    %v1302 = vadd.f32 %v349, %v1301
    %v1303 = vpop.f32.mrb[0].mxu0
    %v1304 = vpop.f32.mrb[0].mxu0
    %v1305 = vadd.f32 %v349, %v1304
    %v1306 = vpop.f32.mrb[0].mxu0
    %1307 = vmatprep.mubr.bf16.mxu0 0
    %1308 = vmatmul.mubr.bf16.gmra.mrb[0].mxu0 %v1246
    %v1309 = vpop.f32.mrb[0].mxu0
    %v1310 = vadd.f32 %v349, %v1309
    %v1311 = vpop.f32.mrb[0].mxu0
    %v1312 = vpop.f32.mrb[0].mxu0
    %v1313 = vadd.f32 %v349, %v1312
    %v1314 = vpop.f32.mrb[0].mxu0
    %1315 = vdwg.mxu0
    %v1316 = vmax.f32 %v1286, 0.0
    %v1317 = vmax.f32 %v1289, 0.0
    %v1318 = vmax.f32 %v1294, 0.0
    %v1319 = vmax.f32 %v1297, 0.0
    %v1320 = vmax.f32 %v1302, 0.0
    %v1321 = vmax.f32 %v1305, 0.0
    %v1322 = vmax.f32 %v1310, 0.0
    %v1323 = vmax.f32 %v1313, 0.0
    %v1324 = vrot.slane %v1316, 4
    %v1325 = vadd.f32 %v1316, %v1324
    %v1326 = vrot.slane %v1325, 2
    %v1327 = vadd.f32 %v1325, %v1326
    %v1328 = vrot.slane %v1327, 1
    %v1329 = vadd.f32 %v1327, %v1328
    %v1330 = vrot.slane %v1317, 4
    %v1331 = vadd.f32 %v1317, %v1330
    %v1332 = vrot.slane %v1331, 2
    %v1333 = vadd.f32 %v1331, %v1332
    %v1334 = vrot.slane %v1333, 1
    %v1335 = vadd.f32 %v1333, %v1334
    %v1336 = vrot.slane %v1318, 4
    %v1337 = vadd.f32 %v1318, %v1336
    %v1338 = vrot.slane %v1337, 2
    %v1339 = vadd.f32 %v1337, %v1338
    %v1340 = vrot.slane %v1339, 1
    %v1341 = vadd.f32 %v1339, %v1340
    %v1342 = vrot.slane %v1319, 4
    %v1343 = vadd.f32 %v1319, %v1342
    %v1344 = vrot.slane %v1343, 2
    %v1345 = vadd.f32 %v1343, %v1344
    %v1346 = vrot.slane %v1345, 1
    %v1347 = vadd.f32 %v1345, %v1346
    %v1348 = vrot.slane %v1320, 4
    %v1349 = vadd.f32 %v1320, %v1348
    %v1350 = vrot.slane %v1349, 2
    %v1351 = vadd.f32 %v1349, %v1350
    %v1352 = vrot.slane %v1351, 1
    %v1353 = vadd.f32 %v1351, %v1352
    %v1354 = vrot.slane %v1321, 4
    %v1355 = vadd.f32 %v1321, %v1354
    %v1356 = vrot.slane %v1355, 2
    %v1357 = vadd.f32 %v1355, %v1356
    %v1358 = vrot.slane %v1357, 1
    %v1359 = vadd.f32 %v1357, %v1358
    %v1360 = vrot.slane %v1322, 4
    %v1361 = vadd.f32 %v1322, %v1360
    %v1362 = vrot.slane %v1361, 2
    %v1363 = vadd.f32 %v1361, %v1362
    %v1364 = vrot.slane %v1363, 1
    %v1365 = vadd.f32 %v1363, %v1364
    %v1366 = vrot.slane %v1323, 4
    %v1367 = vadd.f32 %v1323, %v1366
    %v1368 = vrot.slane %v1367, 2
    %v1369 = vadd.f32 %v1367, %v1368
    %v1370 = vrot.slane %v1369, 1
    %v1371 = vadd.f32 %v1369, %v1370
    %v1372 = vadd.f32 %v1171, %v1329
    %v1373 = vadd.f32 %v1172, %v1335
    %v1374 = vadd.f32 %v1173, %v1341
    %v1375 = vadd.f32 %v1174, %v1347
    %v1376 = vadd.f32 %v1175, %v1353
    %v1377 = vadd.f32 %v1176, %v1359
    %v1378 = vadd.f32 %v1177, %v1365
    %v1379 = vadd.f32 %v1178, %v1371
    %v1380 = vlaneseq
    %v1381 = vshrl.u32 %v1380, 7
    %v1382 = vsub.s32 2, %v1381
    %v1383 = vrot.slane %v553, %v1382
    %v1384 = vlaneseq
    %v1385 = vshrl.u32 %v1384, 7
    %v1386 = vsub.s32 2, %v1385
    %v1387 = vrot.slane %v560, %v1386
    %v1388 = vlaneseq
    %v1389 = vshrl.u32 %v1388, 7
    %v1390 = vsub.s32 2, %v1389
    %v1391 = vrot.slane %v567, %v1390
    %v1392 = vlaneseq
    %v1393 = vshrl.u32 %v1392, 7
    %v1394 = vsub.s32 2, %v1393
    %v1395 = vrot.slane %v574, %v1394
    %v1396 = vlaneseq
    %v1397 = vshrl.u32 %v1396, 7
    %v1398 = vsub.s32 2, %v1397
    %v1399 = vrot.slane %v581, %v1398
    %v1400 = vlaneseq
    %v1401 = vshrl.u32 %v1400, 7
    %v1402 = vsub.s32 2, %v1401
    %v1403 = vrot.slane %v588, %v1402
    %v1404 = vlaneseq
    %v1405 = vshrl.u32 %v1404, 7
    %v1406 = vsub.s32 2, %v1405
    %v1407 = vrot.slane %v595, %v1406
    %v1408 = vlaneseq
    %v1409 = vshrl.u32 %v1408, 7
    %v1410 = vsub.s32 2, %v1409
    %v1411 = vrot.slane %v602, %v1410
    %v1412 = vadd.bf16 %v216, %v1383
    %v1413 = vadd.bf16 %v217, %v1387
    %v1414 = vadd.bf16 %v218, %v1391
    %v1415 = vadd.bf16 %v219, %v1395
    %v1416 = vadd.bf16 %v220, %v1399
    %v1417 = vadd.bf16 %v221, %v1403
    %v1418 = vadd.bf16 %v222, %v1407
    %v1419 = vadd.bf16 %v223, %v1411
    %v1420 = vmax.bf16 %v1412, 0
    %v1421 = vmax.bf16 %v1413, 0
    %v1422 = vmax.bf16 %v1414, 0
    %v1423 = vmax.bf16 %v1415, 0
    %v1424 = vmax.bf16 %v1416, 0
    %v1425 = vmax.bf16 %v1417, 0
    %v1426 = vmax.bf16 %v1418, 0
    %v1427 = vmax.bf16 %v1419, 0
    %v1436 = vunpack.c.l.b16 %v1420
    %v1437 = vunpack.c.l.b16 %v1421
    %v1438 = vunpack.c.l.b16 %v1422
    %v1439 = vunpack.c.l.b16 %v1423
    %v1440 = vunpack.c.l.b16 %v1424
    %v1441 = vunpack.c.l.b16 %v1425
    %v1442 = vunpack.c.l.b16 %v1426
    %v1443 = vunpack.c.l.b16 %v1427
    %v1444 = vpack.c.b16 %v1437, %v1436
    %v1445 = vpack.c.b16 %v1439, %v1438
    %v1446 = vpack.c.b16 %v1441, %v1440
    %v1447 = vpack.c.b16 %v1443, %v1442
    %1452 = vmatprep.subr.bf16.mxu0 0
    %1453 = vmatpush1.bf16.msra.mxu0 %v407
    %1454 = vmatprep.subr.bf16.mxu0 0
    %1455 = vmatpush1.bf16.msra.mxu0 %v408
    %1456 = vmatprep.subr.bf16.mxu0 0
    %1457 = vmatpush1.bf16.msra.mxu0 %v409
    %1458 = vmatprep.subr.bf16.mxu0 0
    %1459 = vmatpush1.bf16.msra.mxu0 %v410
    %1460 = vmatprep.subr.bf16.mxu0 0
    %1461 = vmatpush1.bf16.msra.mxu0 %v411
    %1462 = vmatprep.subr.bf16.mxu0 0
    %1463 = vmatpush1.bf16.msra.mxu0 %v412
    %1464 = vmatprep.subr.bf16.mxu0 0
    %1465 = vmatpush1.bf16.msra.mxu0 %v413
    %1466 = vmatprep.subr.bf16.mxu0 0
    %1467 = vmatpush1.bf16.msra.mxu0 %v414
    %1468 = vmatprep.subr.bf16.mxu0 0
    %1469 = vmatpush1.bf16.msra.mxu0 0
    %1470 = vmatprep.subr.bf16.mxu0 0
    %1471 = vmatpush1.bf16.msra.mxu0 0
    %1472 = vmatprep.subr.bf16.mxu0 0
    %1473 = vmatpush1.bf16.msra.mxu0 0
    %1474 = vmatprep.subr.bf16.mxu0 0
    %1475 = vmatpush1.bf16.msra.mxu0 0
    %1476 = vmatprep.subr.bf16.mxu0 0
    %1477 = vmatpush1.bf16.msra.mxu0 0
    %1478 = vmatprep.subr.bf16.mxu0 0
    %1479 = vmatpush1.bf16.msra.mxu0 0
    %1480 = vmatprep.subr.bf16.mxu0 0
    %1481 = vmatpush1.bf16.msra.mxu0 0
    %1482 = vmatprep.subr.bf16.mxu0 0
    %1483 = vmatpush1.bf16.msra.mxu0 0
    %1484 = vmatprep.mubr.bf16.mxu0 0
    %1485 = vmatmul.mubr.bf16.gmra.mrb[0].mxu0 %v1444
    %v1486 = vpop.f32.mrb[0].mxu0
    %v1487 = vadd.f32 %v349, %v1486
    %v1488 = vpop.f32.mrb[0].mxu0
    %v1489 = vpop.f32.mrb[0].mxu0
    %v1490 = vadd.f32 %v349, %v1489
    %v1491 = vpop.f32.mrb[0].mxu0
    %1492 = vmatprep.mubr.bf16.mxu0 0
    %1493 = vmatmul.mubr.bf16.gmra.mrb[0].mxu0 %v1445
    %v1494 = vpop.f32.mrb[0].mxu0
    %v1495 = vadd.f32 %v349, %v1494
    %v1496 = vpop.f32.mrb[0].mxu0
    %v1497 = vpop.f32.mrb[0].mxu0
    %v1498 = vadd.f32 %v349, %v1497
    %v1499 = vpop.f32.mrb[0].mxu0
    %1500 = vmatprep.mubr.bf16.mxu0 0
    %1501 = vmatmul.mubr.bf16.gmra.mrb[0].mxu0 %v1446
    %v1502 = vpop.f32.mrb[0].mxu0
    %v1503 = vadd.f32 %v349, %v1502
    %v1504 = vpop.f32.mrb[0].mxu0
    %v1505 = vpop.f32.mrb[0].mxu0
    %v1506 = vadd.f32 %v349, %v1505
    %v1507 = vpop.f32.mrb[0].mxu0
    %1508 = vmatprep.mubr.bf16.mxu0 0
    %1509 = vmatmul.mubr.bf16.gmra.mrb[0].mxu0 %v1447
    %v1510 = vpop.f32.mrb[0].mxu0
    %v1511 = vadd.f32 %v349, %v1510
    %v1512 = vpop.f32.mrb[0].mxu0
    %v1513 = vpop.f32.mrb[0].mxu0
    %v1514 = vadd.f32 %v349, %v1513
    %v1515 = vpop.f32.mrb[0].mxu0
    %1516 = vdwg.mxu0
    %v1517 = vmax.f32 %v1487, 0.0
    %v1518 = vmax.f32 %v1490, 0.0
    %v1519 = vmax.f32 %v1495, 0.0
    %v1520 = vmax.f32 %v1498, 0.0
    %v1521 = vmax.f32 %v1503, 0.0
    %v1522 = vmax.f32 %v1506, 0.0
    %v1523 = vmax.f32 %v1511, 0.0
    %v1524 = vmax.f32 %v1514, 0.0
    %v1525 = vrot.slane %v1517, 4
    %v1526 = vadd.f32 %v1517, %v1525
    %v1527 = vrot.slane %v1526, 2
    %v1528 = vadd.f32 %v1526, %v1527
    %v1529 = vrot.slane %v1528, 1
    %v1530 = vadd.f32 %v1528, %v1529
    %v1531 = vrot.slane %v1518, 4
    %v1532 = vadd.f32 %v1518, %v1531
    %v1533 = vrot.slane %v1532, 2
    %v1534 = vadd.f32 %v1532, %v1533
    %v1535 = vrot.slane %v1534, 1
    %v1536 = vadd.f32 %v1534, %v1535
    %v1537 = vrot.slane %v1519, 4
    %v1538 = vadd.f32 %v1519, %v1537
    %v1539 = vrot.slane %v1538, 2
    %v1540 = vadd.f32 %v1538, %v1539
    %v1541 = vrot.slane %v1540, 1
    %v1542 = vadd.f32 %v1540, %v1541
    %v1543 = vrot.slane %v1520, 4
    %v1544 = vadd.f32 %v1520, %v1543
    %v1545 = vrot.slane %v1544, 2
    %v1546 = vadd.f32 %v1544, %v1545
    %v1547 = vrot.slane %v1546, 1
    %v1548 = vadd.f32 %v1546, %v1547
    %v1549 = vrot.slane %v1521, 4
    %v1550 = vadd.f32 %v1521, %v1549
    %v1551 = vrot.slane %v1550, 2
    %v1552 = vadd.f32 %v1550, %v1551
    %v1553 = vrot.slane %v1552, 1
    %v1554 = vadd.f32 %v1552, %v1553
    %v1555 = vrot.slane %v1522, 4
    %v1556 = vadd.f32 %v1522, %v1555
    %v1557 = vrot.slane %v1556, 2
    %v1558 = vadd.f32 %v1556, %v1557
    %v1559 = vrot.slane %v1558, 1
    %v1560 = vadd.f32 %v1558, %v1559
    %v1561 = vrot.slane %v1523, 4
    %v1562 = vadd.f32 %v1523, %v1561
    %v1563 = vrot.slane %v1562, 2
    %v1564 = vadd.f32 %v1562, %v1563
    %v1565 = vrot.slane %v1564, 1
    %v1566 = vadd.f32 %v1564, %v1565
    %v1567 = vrot.slane %v1524, 4
    %v1568 = vadd.f32 %v1524, %v1567
    %v1569 = vrot.slane %v1568, 2
    %v1570 = vadd.f32 %v1568, %v1569
    %v1571 = vrot.slane %v1570, 1
    %v1572 = vadd.f32 %v1570, %v1571
    %v1573 = vadd.f32 %v1372, %v1530
    %v1574 = vadd.f32 %v1373, %v1536
    %v1575 = vadd.f32 %v1374, %v1542
    %v1576 = vadd.f32 %v1375, %v1548
    %v1577 = vadd.f32 %v1376, %v1554
    %v1578 = vadd.f32 %v1377, %v1560
    %v1579 = vadd.f32 %v1378, %v1566
    %v1580 = vadd.f32 %v1379, %v1572
    %v1581 = vlaneseq
    %v1582 = vshrl.u32 %v1581, 7
    %v1583 = vsub.s32 3, %v1582
    %v1584 = vrot.slane %v274, %v1583
    %v1585 = vlaneseq
    %v1586 = vshrl.u32 %v1585, 7
    %v1587 = vsub.s32 3, %v1586
    %v1588 = vrot.slane %v281, %v1587
    %v1589 = vlaneseq
    %v1590 = vshrl.u32 %v1589, 7
    %v1591 = vsub.s32 3, %v1590
    %v1592 = vrot.slane %v288, %v1591
    %v1593 = vlaneseq
    %v1594 = vshrl.u32 %v1593, 7
    %v1595 = vsub.s32 3, %v1594
    %v1596 = vrot.slane %v295, %v1595
    %v1597 = vlaneseq
    %v1598 = vshrl.u32 %v1597, 7
    %v1599 = vsub.s32 3, %v1598
    %v1600 = vrot.slane %v302, %v1599
    %v1601 = vlaneseq
    %v1602 = vshrl.u32 %v1601, 7
    %v1603 = vsub.s32 3, %v1602
    %v1604 = vrot.slane %v309, %v1603
    %v1605 = vlaneseq
    %v1606 = vshrl.u32 %v1605, 7
    %v1607 = vsub.s32 3, %v1606
    %v1608 = vrot.slane %v316, %v1607
    %v1609 = vlaneseq
    %v1610 = vshrl.u32 %v1609, 7
    %v1611 = vsub.s32 3, %v1610
    %v1612 = vrot.slane %v323, %v1611
    %v1613 = vadd.bf16 %v216, %v1584
    %v1614 = vadd.bf16 %v217, %v1588
    %v1615 = vadd.bf16 %v218, %v1592
    %v1616 = vadd.bf16 %v219, %v1596
    %v1617 = vadd.bf16 %v220, %v1600
    %v1618 = vadd.bf16 %v221, %v1604
    %v1619 = vadd.bf16 %v222, %v1608
    %v1620 = vadd.bf16 %v223, %v1612
    %v1621 = vmax.bf16 %v1613, 0
    %v1622 = vmax.bf16 %v1614, 0
    %v1623 = vmax.bf16 %v1615, 0
    %v1624 = vmax.bf16 %v1616, 0
    %v1625 = vmax.bf16 %v1617, 0
    %v1626 = vmax.bf16 %v1618, 0
    %v1627 = vmax.bf16 %v1619, 0
    %v1628 = vmax.bf16 %v1620, 0
    %v1637 = vunpack.c.l.b16 %v1621
    %v1638 = vunpack.c.l.b16 %v1622
    %v1639 = vunpack.c.l.b16 %v1623
    %v1640 = vunpack.c.l.b16 %v1624
    %v1641 = vunpack.c.l.b16 %v1625
    %v1642 = vunpack.c.l.b16 %v1626
    %v1643 = vunpack.c.l.b16 %v1627
    %v1644 = vunpack.c.l.b16 %v1628
    %v1645 = vpack.c.b16 %v1638, %v1637
    %v1646 = vpack.c.b16 %v1640, %v1639
    %v1647 = vpack.c.b16 %v1642, %v1641
    %v1648 = vpack.c.b16 %v1644, %v1643
    %1653 = vmatprep.subr.bf16.mxu0 0
    %1654 = vmatpush1.bf16.msra.mxu0 %v407
    %1655 = vmatprep.subr.bf16.mxu0 0
    %1656 = vmatpush1.bf16.msra.mxu0 %v408
    %1657 = vmatprep.subr.bf16.mxu0 0
    %1658 = vmatpush1.bf16.msra.mxu0 %v409
    %1659 = vmatprep.subr.bf16.mxu0 0
    %1660 = vmatpush1.bf16.msra.mxu0 %v410
    %1661 = vmatprep.subr.bf16.mxu0 0
    %1662 = vmatpush1.bf16.msra.mxu0 %v411
    %1663 = vmatprep.subr.bf16.mxu0 0
    %1664 = vmatpush1.bf16.msra.mxu0 %v412
    %1665 = vmatprep.subr.bf16.mxu0 0
    %1666 = vmatpush1.bf16.msra.mxu0 %v413
    %1667 = vmatprep.subr.bf16.mxu0 0
    %1668 = vmatpush1.bf16.msra.mxu0 %v414
    %1669 = vmatprep.subr.bf16.mxu0 0
    %1670 = vmatpush1.bf16.msra.mxu0 0
    %1671 = vmatprep.subr.bf16.mxu0 0
    %1672 = vmatpush1.bf16.msra.mxu0 0
    %1673 = vmatprep.subr.bf16.mxu0 0
    %1674 = vmatpush1.bf16.msra.mxu0 0
    %1675 = vmatprep.subr.bf16.mxu0 0
    %1676 = vmatpush1.bf16.msra.mxu0 0
    %1677 = vmatprep.subr.bf16.mxu0 0
    %1678 = vmatpush1.bf16.msra.mxu0 0
    %1679 = vmatprep.subr.bf16.mxu0 0
    %1680 = vmatpush1.bf16.msra.mxu0 0
    %1681 = vmatprep.subr.bf16.mxu0 0
    %1682 = vmatpush1.bf16.msra.mxu0 0
    %1683 = vmatprep.subr.bf16.mxu0 0
    %1684 = vmatpush1.bf16.msra.mxu0 0
    %1685 = vmatprep.mubr.bf16.mxu0 0
    %1686 = vmatmul.mubr.bf16.gmra.mrb[0].mxu0 %v1645
    %v1687 = vpop.f32.mrb[0].mxu0
    %v1688 = vadd.f32 %v349, %v1687
    %v1689 = vpop.f32.mrb[0].mxu0
    %v1690 = vpop.f32.mrb[0].mxu0
    %v1691 = vadd.f32 %v349, %v1690
    %v1692 = vpop.f32.mrb[0].mxu0
    %1693 = vmatprep.mubr.bf16.mxu0 0
    %1694 = vmatmul.mubr.bf16.gmra.mrb[0].mxu0 %v1646
    %v1695 = vpop.f32.mrb[0].mxu0
    %v1696 = vadd.f32 %v349, %v1695
    %v1697 = vpop.f32.mrb[0].mxu0
    %v1698 = vpop.f32.mrb[0].mxu0
    %v1699 = vadd.f32 %v349, %v1698
    %v1700 = vpop.f32.mrb[0].mxu0
    %1701 = vmatprep.mubr.bf16.mxu0 0
    %1702 = vmatmul.mubr.bf16.gmra.mrb[0].mxu0 %v1647
    %v1703 = vpop.f32.mrb[0].mxu0
    %v1704 = vadd.f32 %v349, %v1703
    %v1705 = vpop.f32.mrb[0].mxu0
    %v1706 = vpop.f32.mrb[0].mxu0
    %v1707 = vadd.f32 %v349, %v1706
    %v1708 = vpop.f32.mrb[0].mxu0
    %1709 = vmatprep.mubr.bf16.mxu0 0
    %1710 = vmatmul.mubr.bf16.gmra.mrb[0].mxu0 %v1648
    %v1711 = vpop.f32.mrb[0].mxu0
    %v1712 = vadd.f32 %v349, %v1711
    %v1713 = vpop.f32.mrb[0].mxu0
    %v1714 = vpop.f32.mrb[0].mxu0
    %v1715 = vadd.f32 %v349, %v1714
    %v1716 = vpop.f32.mrb[0].mxu0
    %1717 = vdwg.mxu0
    %v1718 = vmax.f32 %v1688, 0.0
    %v1719 = vmax.f32 %v1691, 0.0
    %v1720 = vmax.f32 %v1696, 0.0
    %v1721 = vmax.f32 %v1699, 0.0
    %v1722 = vmax.f32 %v1704, 0.0
    %v1723 = vmax.f32 %v1707, 0.0
    %v1724 = vmax.f32 %v1712, 0.0
    %v1725 = vmax.f32 %v1715, 0.0
    %v1726 = vrot.slane %v1718, 4
    %v1727 = vadd.f32 %v1718, %v1726
    %v1728 = vrot.slane %v1727, 2
    %v1729 = vadd.f32 %v1727, %v1728
    %v1730 = vrot.slane %v1729, 1
    %v1731 = vadd.f32 %v1729, %v1730
    %v1732 = vrot.slane %v1719, 4
    %v1733 = vadd.f32 %v1719, %v1732
    %v1734 = vrot.slane %v1733, 2
    %v1735 = vadd.f32 %v1733, %v1734
    %v1736 = vrot.slane %v1735, 1
    %v1737 = vadd.f32 %v1735, %v1736
    %v1738 = vrot.slane %v1720, 4
    %v1739 = vadd.f32 %v1720, %v1738
    %v1740 = vrot.slane %v1739, 2
    %v1741 = vadd.f32 %v1739, %v1740
    %v1742 = vrot.slane %v1741, 1
    %v1743 = vadd.f32 %v1741, %v1742
    %v1744 = vrot.slane %v1721, 4
    %v1745 = vadd.f32 %v1721, %v1744
    %v1746 = vrot.slane %v1745, 2
    %v1747 = vadd.f32 %v1745, %v1746
    %v1748 = vrot.slane %v1747, 1
    %v1749 = vadd.f32 %v1747, %v1748
    %v1750 = vrot.slane %v1722, 4
    %v1751 = vadd.f32 %v1722, %v1750
    %v1752 = vrot.slane %v1751, 2
    %v1753 = vadd.f32 %v1751, %v1752
    %v1754 = vrot.slane %v1753, 1
    %v1755 = vadd.f32 %v1753, %v1754
    %v1756 = vrot.slane %v1723, 4
    %v1757 = vadd.f32 %v1723, %v1756
    %v1758 = vrot.slane %v1757, 2
    %v1759 = vadd.f32 %v1757, %v1758
    %v1760 = vrot.slane %v1759, 1
    %v1761 = vadd.f32 %v1759, %v1760
    %v1762 = vrot.slane %v1724, 4
    %v1763 = vadd.f32 %v1724, %v1762
    %v1764 = vrot.slane %v1763, 2
    %v1765 = vadd.f32 %v1763, %v1764
    %v1766 = vrot.slane %v1765, 1
    %v1767 = vadd.f32 %v1765, %v1766
    %v1768 = vrot.slane %v1725, 4
    %v1769 = vadd.f32 %v1725, %v1768
    %v1770 = vrot.slane %v1769, 2
    %v1771 = vadd.f32 %v1769, %v1770
    %v1772 = vrot.slane %v1771, 1
    %v1773 = vadd.f32 %v1771, %v1772
    %v1774 = vadd.f32 %v1573, %v1731
    %v1775 = vadd.f32 %v1574, %v1737
    %v1776 = vadd.f32 %v1575, %v1743
    %v1777 = vadd.f32 %v1576, %v1749
    %v1778 = vadd.f32 %v1577, %v1755
    %v1779 = vadd.f32 %v1578, %v1761
    %v1780 = vadd.f32 %v1579, %v1767
    %v1781 = vadd.f32 %v1580, %v1773
    %v1782 = vlaneseq
    %v1783 = vshrl.u32 %v1782, 7
    %v1784 = vsub.s32 3, %v1783
    %v1785 = vrot.slane %v553, %v1784
    %v1786 = vlaneseq
    %v1787 = vshrl.u32 %v1786, 7
    %v1788 = vsub.s32 3, %v1787
    %v1789 = vrot.slane %v560, %v1788
    %v1790 = vlaneseq
    %v1791 = vshrl.u32 %v1790, 7
    %v1792 = vsub.s32 3, %v1791
    %v1793 = vrot.slane %v567, %v1792
    %v1794 = vlaneseq
    %v1795 = vshrl.u32 %v1794, 7
    %v1796 = vsub.s32 3, %v1795
    %v1797 = vrot.slane %v574, %v1796
    %v1798 = vlaneseq
    %v1799 = vshrl.u32 %v1798, 7
    %v1800 = vsub.s32 3, %v1799
    %v1801 = vrot.slane %v581, %v1800
    %v1802 = vlaneseq
    %v1803 = vshrl.u32 %v1802, 7
    %v1804 = vsub.s32 3, %v1803
    %v1805 = vrot.slane %v588, %v1804
    %v1806 = vlaneseq
    %v1807 = vshrl.u32 %v1806, 7
    %v1808 = vsub.s32 3, %v1807
    %v1809 = vrot.slane %v595, %v1808
    %v1810 = vlaneseq
    %v1811 = vshrl.u32 %v1810, 7
    %v1812 = vsub.s32 3, %v1811
    %v1813 = vrot.slane %v602, %v1812
    %v1814 = vadd.bf16 %v216, %v1785
    %v1815 = vadd.bf16 %v217, %v1789
    %v1816 = vadd.bf16 %v218, %v1793
    %v1817 = vadd.bf16 %v219, %v1797
    %v1818 = vadd.bf16 %v220, %v1801
    %v1819 = vadd.bf16 %v221, %v1805
    %v1820 = vadd.bf16 %v222, %v1809
    %v1821 = vadd.bf16 %v223, %v1813
    %v1822 = vmax.bf16 %v1814, 0
    %v1823 = vmax.bf16 %v1815, 0
    %v1824 = vmax.bf16 %v1816, 0
    %v1825 = vmax.bf16 %v1817, 0
    %v1826 = vmax.bf16 %v1818, 0
    %v1827 = vmax.bf16 %v1819, 0
    %v1828 = vmax.bf16 %v1820, 0
    %v1829 = vmax.bf16 %v1821, 0
    %v1838 = vunpack.c.l.b16 %v1822
    %v1839 = vunpack.c.l.b16 %v1823
    %v1840 = vunpack.c.l.b16 %v1824
    %v1841 = vunpack.c.l.b16 %v1825
    %v1842 = vunpack.c.l.b16 %v1826
    %v1843 = vunpack.c.l.b16 %v1827
    %v1844 = vunpack.c.l.b16 %v1828
    %v1845 = vunpack.c.l.b16 %v1829
    %v1846 = vpack.c.b16 %v1839, %v1838
    %v1847 = vpack.c.b16 %v1841, %v1840
    %v1848 = vpack.c.b16 %v1843, %v1842
    %v1849 = vpack.c.b16 %v1845, %v1844
    %1854 = vmatprep.subr.bf16.mxu0 0
    %1855 = vmatpush1.bf16.msra.mxu0 %v407
    %1856 = vmatprep.subr.bf16.mxu0 0
    %1857 = vmatpush1.bf16.msra.mxu0 %v408
    %1858 = vmatprep.subr.bf16.mxu0 0
    %1859 = vmatpush1.bf16.msra.mxu0 %v409
    %1860 = vmatprep.subr.bf16.mxu0 0
    %1861 = vmatpush1.bf16.msra.mxu0 %v410
    %1862 = vmatprep.subr.bf16.mxu0 0
    %1863 = vmatpush1.bf16.msra.mxu0 %v411
    %1864 = vmatprep.subr.bf16.mxu0 0
    %1865 = vmatpush1.bf16.msra.mxu0 %v412
    %1866 = vmatprep.subr.bf16.mxu0 0
    %1867 = vmatpush1.bf16.msra.mxu0 %v413
    %1868 = vmatprep.subr.bf16.mxu0 0
    %1869 = vmatpush1.bf16.msra.mxu0 %v414
    %1870 = vmatprep.subr.bf16.mxu0 0
    %1871 = vmatpush1.bf16.msra.mxu0 0
    %1872 = vmatprep.subr.bf16.mxu0 0
    %1873 = vmatpush1.bf16.msra.mxu0 0
    %1874 = vmatprep.subr.bf16.mxu0 0
    %1875 = vmatpush1.bf16.msra.mxu0 0
    %1876 = vmatprep.subr.bf16.mxu0 0
    %1877 = vmatpush1.bf16.msra.mxu0 0
    %1878 = vmatprep.subr.bf16.mxu0 0
    %1879 = vmatpush1.bf16.msra.mxu0 0
    %1880 = vmatprep.subr.bf16.mxu0 0
    %1881 = vmatpush1.bf16.msra.mxu0 0
    %1882 = vmatprep.subr.bf16.mxu0 0
    %1883 = vmatpush1.bf16.msra.mxu0 0
    %1884 = vmatprep.subr.bf16.mxu0 0
    %1885 = vmatpush1.bf16.msra.mxu0 0
    %1886 = vmatprep.mubr.bf16.mxu0 0
    %1887 = vmatmul.mubr.bf16.gmra.mrb[0].mxu0 %v1846
    %v1888 = vpop.f32.mrb[0].mxu0
    %v1889 = vadd.f32 %v349, %v1888
    %v1890 = vpop.f32.mrb[0].mxu0
    %v1891 = vpop.f32.mrb[0].mxu0
    %v1892 = vadd.f32 %v349, %v1891
    %v1893 = vpop.f32.mrb[0].mxu0
    %1894 = vmatprep.mubr.bf16.mxu0 0
    %1895 = vmatmul.mubr.bf16.gmra.mrb[0].mxu0 %v1847
    %v1896 = vpop.f32.mrb[0].mxu0
    %v1897 = vadd.f32 %v349, %v1896
    %v1898 = vpop.f32.mrb[0].mxu0
    %v1899 = vpop.f32.mrb[0].mxu0
    %v1900 = vadd.f32 %v349, %v1899
    %v1901 = vpop.f32.mrb[0].mxu0
    %1902 = vmatprep.mubr.bf16.mxu0 0
    %1903 = vmatmul.mubr.bf16.gmra.mrb[0].mxu0 %v1848
    %v1904 = vpop.f32.mrb[0].mxu0
    %v1905 = vadd.f32 %v349, %v1904
    %v1906 = vpop.f32.mrb[0].mxu0
    %v1907 = vpop.f32.mrb[0].mxu0
    %v1908 = vadd.f32 %v349, %v1907
    %v1909 = vpop.f32.mrb[0].mxu0
    %1910 = vmatprep.mubr.bf16.mxu0 0
    %1911 = vmatmul.mubr.bf16.gmra.mrb[0].mxu0 %v1849
    %v1912 = vpop.f32.mrb[0].mxu0
    %v1913 = vadd.f32 %v349, %v1912
    %v1914 = vpop.f32.mrb[0].mxu0
    %v1915 = vpop.f32.mrb[0].mxu0
    %v1916 = vadd.f32 %v349, %v1915
    %v1917 = vpop.f32.mrb[0].mxu0
    %1918 = vdwg.mxu0
    %v1919 = vmax.f32 %v1889, 0.0
    %v1920 = vmax.f32 %v1892, 0.0
    %v1921 = vmax.f32 %v1897, 0.0
    %v1922 = vmax.f32 %v1900, 0.0
    %v1923 = vmax.f32 %v1905, 0.0
    %v1924 = vmax.f32 %v1908, 0.0
    %v1925 = vmax.f32 %v1913, 0.0
    %v1926 = vmax.f32 %v1916, 0.0
    %v1927 = vrot.slane %v1919, 4
    %v1928 = vadd.f32 %v1919, %v1927
    %v1929 = vrot.slane %v1928, 2
    %v1930 = vadd.f32 %v1928, %v1929
    %v1931 = vrot.slane %v1930, 1
    %v1932 = vadd.f32 %v1930, %v1931
    %v1933 = vrot.slane %v1920, 4
    %v1934 = vadd.f32 %v1920, %v1933
    %v1935 = vrot.slane %v1934, 2
    %v1936 = vadd.f32 %v1934, %v1935
    %v1937 = vrot.slane %v1936, 1
    %v1938 = vadd.f32 %v1936, %v1937
    %v1939 = vrot.slane %v1921, 4
    %v1940 = vadd.f32 %v1921, %v1939
    %v1941 = vrot.slane %v1940, 2
    %v1942 = vadd.f32 %v1940, %v1941
    %v1943 = vrot.slane %v1942, 1
    %v1944 = vadd.f32 %v1942, %v1943
    %v1945 = vrot.slane %v1922, 4
    %v1946 = vadd.f32 %v1922, %v1945
    %v1947 = vrot.slane %v1946, 2
    %v1948 = vadd.f32 %v1946, %v1947
    %v1949 = vrot.slane %v1948, 1
    %v1950 = vadd.f32 %v1948, %v1949
    %v1951 = vrot.slane %v1923, 4
    %v1952 = vadd.f32 %v1923, %v1951
    %v1953 = vrot.slane %v1952, 2
    %v1954 = vadd.f32 %v1952, %v1953
    %v1955 = vrot.slane %v1954, 1
    %v1956 = vadd.f32 %v1954, %v1955
    %v1957 = vrot.slane %v1924, 4
    %v1958 = vadd.f32 %v1924, %v1957
    %v1959 = vrot.slane %v1958, 2
    %v1960 = vadd.f32 %v1958, %v1959
    %v1961 = vrot.slane %v1960, 1
    %v1962 = vadd.f32 %v1960, %v1961
    %v1963 = vrot.slane %v1925, 4
    %v1964 = vadd.f32 %v1925, %v1963
    %v1965 = vrot.slane %v1964, 2
    %v1966 = vadd.f32 %v1964, %v1965
    %v1967 = vrot.slane %v1966, 1
    %v1968 = vadd.f32 %v1966, %v1967
    %v1969 = vrot.slane %v1926, 4
    %v1970 = vadd.f32 %v1926, %v1969
    %v1971 = vrot.slane %v1970, 2
    %v1972 = vadd.f32 %v1970, %v1971
    %v1973 = vrot.slane %v1972, 1
    %v1974 = vadd.f32 %v1972, %v1973
    %v1975 = vadd.f32 %v1774, %v1932
    %v1976 = vadd.f32 %v1775, %v1938
    %v1977 = vadd.f32 %v1776, %v1944
    %v1978 = vadd.f32 %v1777, %v1950
    %v1979 = vadd.f32 %v1778, %v1956
    %v1980 = vadd.f32 %v1779, %v1962
    %v1981 = vadd.f32 %v1780, %v1968
    %v1982 = vadd.f32 %v1781, %v1974
    %vm1991 = vcmask 1041409
    %v1992 = vsel %vm1991, %v1976, %v1975
    %vm1993 = vcmask 1042434
    %v1994 = vsel %vm1993, %v1977, %v1992
    %vm1995 = vcmask 1043459
    %v1996 = vsel %vm1995, %v1978, %v1994
    %vm1997 = vcmask 1044484
    %v1998 = vsel %vm1997, %v1979, %v1996
    %vm1999 = vcmask 1045509
    %v2000 = vsel %vm1999, %v1980, %v1998
    %vm2001 = vcmask 1046534
    %v2002 = vsel %vm2001, %v1981, %v2000
    %vm2003 = vcmask 1047559
    %v2004 = vsel %vm2003, %v1982, %v2002
    %2006 = vst [vmem:[#allocation8] sm:$0xff] %v2004
    // Predicated region
    $region34: #{tpu_custom_call.1} parent=1 // pred_check
      _
    $region35: #{tpu_custom_call.1} parent=1 // pred_check_branch
      %2008 = sbr.rel (0) target = $region37
    $region36: #{tpu_custom_call.1} parent=1 // pred_region
      %s2010 = ssub.s32 128, 128
      %2011 = vsyncadd [#allocation4], %s2010
      %s2013 = sshll.u32 [#allocation8], 4
      %s2014 = int_to_ptr.vmem [resolvable:$true] %s2013
      %2016 = dma.vmem_to_hbm [thread:$0]  %s2014, 128, %s5, [#allocation4]
    $region37: #{tpu_custom_call.1} parent=1 // pred_fallthru
      _
    // Predicated region
    $region38: #{tpu_custom_call.1} parent=1 // pred_check
      _
    $region39: #{tpu_custom_call.1} parent=1 // pred_check_branch
      %2018 = sbr.rel (0) target = $region41
    $region40: #{tpu_custom_call.1} parent=1 // pred_region
      %2019 = dma.done [#allocation4], 128
    $region41: #{tpu_custom_call.1} parent=1 // pred_fallthru
      _
    %2020 = vsyncpa [#allocation3], 1
    %2021 = vsyncpa [#allocation6], 1
    %2022 = vsyncpa [#allocation4], 1

</llo_original>
